<compile_context>
chip_gen: v6e
topology: v6e:2x2x1
jax: 0.10.0
libtpu: 0.0.40
codegen_flags: <defaults>
</compile_context>

<pallas_src>
import functools
import math

import jax
import jax.numpy as jnp
from jax.experimental import pallas as pl
from jax.experimental.pallas import tpu as pltpu


def _round_up(x, m):
    return (x + m - 1) // m * m


def _cdiv(a, b):
    return -(-a // b)


# --------------------------------------------------------------------------
# Kernel
# --------------------------------------------------------------------------
def _multihead_v4_kernel(
    x_ref,      # (TB, THW, C)  streamed feature-map tile (bf16)
    bn0_ref,    # (2, C)        row 0: BN0 scale, row 1: BN0 shift (f32)
    w1_ref,     # (C, DF)       fused fc1 (heads concatenated), bf16
    w2_ref,     # (DF, DF)      block-diag fc2 with BN1/BN2 folded, bf16
    b2_ref,     # (1, DF)       folded bias for the fc2 path (f32)
    wc_ref,     # (DF, NP)      block-diag classifier, lane-padded, bf16
    feat_ref,   # (TB, C)       pooled + BN0 features                (out)
    fcat_ref,   # (TB, DF)      concatenated head features           (out)
    lcat_ref,   # (TB, NP)      concatenated (padded) logits         (out)
    acc_ref,    # (TB, C) f32   pooling accumulator                  (scratch)
    *, inv_hw, hw, thw, needs_mask,
):
    s = pl.program_id(1)

    @pl.when(s == 0)
    def _():
        acc_ref[...] = jnp.zeros_like(acc_ref)

    # Partial global-average-pool: sum over the spatial (sublane) axis in f32.
    xt = x_ref[...].astype(jnp.float32)
    if needs_mask:  # static: only emitted when the last spatial tile is ragged
        pos = s * thw + jax.lax.broadcasted_iota(jnp.int32, (1, thw, 1), 1)
        xt = jnp.where(pos < hw, xt, 0.0)
    acc_ref[...] += jnp.sum(xt, axis=1)

    @pl.when(s == pl.num_programs(1) - 1)
    def _():
        bn0 = bn0_ref[...]
        feat = acc_ref[...] * inv_hw                     # AdaptiveAvgPool2d(1)
        x_bn = feat * bn0[0:1, :] + bn0[1:2, :]          # BatchNorm1d(C), eval
        feat_ref[...] = x_bn.astype(feat_ref.dtype)

        # Fused HeadV4 x3: fc1 (no bias) -> ReLU, then the folded
        # (BN1, fc2, BN2) matmul + bias, then block-diagonal classifier.
        h = jnp.dot(x_bn.astype(w1_ref.dtype), w1_ref[...],
                    preferred_element_type=jnp.float32)
        h = jnp.maximum(h, 0.0)
        f = jnp.dot(h.astype(w2_ref.dtype), w2_ref[...],
                    preferred_element_type=jnp.float32) + b2_ref[...]
        fcat_ref[...] = f.astype(fcat_ref.dtype)
        lcat_ref[...] = jnp.dot(f.astype(wc_ref.dtype), wc_ref[...],
                                preferred_element_type=jnp.float32
                                ).astype(lcat_ref.dtype)


# --------------------------------------------------------------------------
# Parameters (shapes mirror MultiHeadV4; Linear weights stored as (in, out))
# --------------------------------------------------------------------------
def init_multihead_v4_params(key, in_channel, dims=(256, 64, 64),
                             n_classes=(168, 11, 7), dtype=jnp.float32):
    """BN running stats are randomized so the inference-BN fold is exercised."""
    def bn(k, d):
        kg, kb, km, kv = jax.random.split(k, 4)
        return dict(
            gamma=1.0 + 0.2 * jax.random.normal(kg, (d,), dtype),
            beta=0.1 * jax.random.normal(kb, (d,), dtype),
            mean=0.1 * jax.random.normal(km, (d,), dtype),
            var=jnp.abs(1.0 + 0.2 * jax.random.normal(kv, (d,), dtype)) + 0.1,
        )

    keys = jax.random.split(key, 5 * len(dims) + 1)
    heads = []
    for i, (d, nc) in enumerate(zip(dims, n_classes)):
        k1, k2, k3, k4, k5 = keys[5 * i:5 * i + 5]
        heads.append(dict(
            w1=jax.random.normal(k1, (in_channel, d), dtype) * math.sqrt(2.0 / in_channel),
            bn1=bn(k4, d),
            w2=jax.random.normal(k2, (d, d), dtype) * math.sqrt(2.0 / d),
            bn2=bn(k5, d),
            wc=jax.random.normal(k3, (d, nc), dtype) * 0.01,
        ))
    return dict(bn0=bn(keys[-1], in_channel), heads=heads)


def _bn_scale_shift(bn, eps=1e-5):
    s = bn['gamma'] / jnp.sqrt(bn['var'] + eps)
    t = bn['beta'] - bn['mean'] * s
    return s, t


def pack_multihead_v4_params(params, eps=1e-5, lane=128,
                             weight_dtype=jnp.bfloat16):
    """Fold eval-mode BN into the Linear weights and fuse the three heads."""
    s0, t0 = _bn_scale_shift(params['bn0'], eps)

    w1_list, w2f_list, b2f_list, wc_list, dims, ncls = [], [], [], [], [], []
    for h in params['heads']:
        s1, t1 = _bn_scale_shift(h['bn1'], eps)
        s2, t2 = _bn_scale_shift(h['bn2'], eps)
        # HeadV4 order is fc1 -> ReLU -> BN1 -> fc2 -> BN2, so with r = relu(fc1):
        #   BN2(fc2(BN1(r))) = r @ W2f + b2f
        w2f_list.append((s1[:, None] * h['w2']) * s2[None, :])
        b2f_list.append((t1 @ h['w2']) * s2 + t2)
        w1_list.append(h['w1'])
        wc_list.append(h['wc'])
        dims.append(h['w1'].shape[1])
        ncls.append(h['wc'].shape[1])

    n_total = sum(ncls)
    n_pad = _round_up(n_total, lane)                    # lane-dense logit store

    w1_cat = jnp.concatenate(w1_list, axis=1)           # (C, DF)
    w2_cat = jax.scipy.linalg.block_diag(*w2f_list)     # (DF, DF)
    b2_cat = jnp.concatenate(b2f_list)[None, :]         # (1, DF)
    wc_cat = jax.scipy.linalg.block_diag(*wc_list)      # (DF, Nsum)
    wc_cat = jnp.pad(wc_cat, ((0, 0), (0, n_pad - n_total)))

    return dict(
        bn0=jnp.stack([s0, t0]).astype(jnp.float32),    # (2, C) scale/shift
        w1=w1_cat.astype(weight_dtype),
        w2=w2_cat.astype(weight_dtype),
        b2=b2_cat.astype(jnp.float32),
        wc=wc_cat.astype(weight_dtype),
        dims=tuple(dims), ncls=tuple(ncls), n_pad=n_pad)


# --------------------------------------------------------------------------
# Forward wrapper
# --------------------------------------------------------------------------
def multihead_v4_forward(x, packed, *, channels_last=True,
                         stream_dtype=jnp.bfloat16,
                         max_spatial_tile=512,
                         x_tile_budget_bytes=16 << 20,
                         single_buffer_weights=False):
    """x: feature map, channels-last (B,H,W,C) / (B,HW,C) preferred (no
    relayout); NCHW accepted as a fallback. Returns (feat, feat_g, logit_g,
    feat_v, logit_v, feat_c, logit_c) matching MultiHeadV4.forward (eval BN)."""
    if channels_last:
        if x.ndim == 4:
            B, H, W, C = x.shape
            x_r = x.reshape(B, H * W, C)   # free: collapses adjacent dims
        else:
            B, _, C = x.shape
            x_r = x
    else:
        # TODO(synk): have the backbone emit NHWC so this extra HBM relayout
        # pass disappears entirely.
        B, C = x.shape[0], x.shape[1]
        x4 = x if x.ndim == 4 else x[:, :, :, None]
        x_r = jnp.transpose(x4, (0, 2, 3, 1)).reshape(B, -1, C)
    HW = x_r.shape[1]
    if stream_dtype is not None and x_r.dtype != stream_dtype:
        # Ideally the producer already emits this dtype (fused cast upstream).
        x_r = x_r.astype(stream_dtype)
    itemsize = jnp.dtype(x_r.dtype).itemsize

    dims, ncls, n_pad = packed['dims'], packed['ncls'], packed['n_pad']
    DF = sum(dims)

    # ---- batch tile: keep >=2 batch tiles at B=16 so the "parallel" axis
    # spans both v7x TensorCores; ragged last tile handled by Pallas.
    if B >= 32:
        TB = 16
    elif B >= 8:
        TB = 8
    else:
        TB = B
    nb = _cdiv(B, TB)

    # ---- spatial tile: biggest tile under the (double-buffered) budget,
    # rounded to the bf16 sublane pack; ragged tail masked in-kernel.
    sub = 16 if itemsize == 2 else 8
    cap = max(sub,
              (x_tile_budget_bytes // max(1, 2 * TB * C * itemsize)) // sub * sub)
    max_tile = _round_up(max_spatial_tile, sub)
    if HW <= min(cap, max_tile):
        THW = HW                      # single spatial step, full-dim block
    else:
        THW = int(min(cap, max_tile))
    ns = _cdiv(HW, THW)
    needs_mask = (HW % THW) != 0

    kernel = functools.partial(_multihead_v4_kernel, inv_hw=1.0 / float(HW),
                               hw=HW, thw=THW, needs_mask=needs_mask)

    out_shape = (
        jax.ShapeDtypeStruct((B, C), jnp.float32),       # pooled + BN0 feat
        jax.ShapeDtypeStruct((B, DF), jnp.float32),      # concat head feats
        jax.ShapeDtypeStruct((B, n_pad), jnp.float32),   # concat padded logits
    )

    def const(shape):
        # Weight/BN operands: constant index_map -> resident in VMEM for the
        # whole grid.  Single-buffering them (v7x VMEM headroom) is optional.
        if single_buffer_weights:
            return pl.BlockSpec(shape, lambda b, s: (0, 0),
                                pipeline_mode=pl.Buffered(1))
        return pl.BlockSpec(shape, lambda b, s: (0, 0))

    grid_spec = pltpu.PrefetchScalarGridSpec(
        num_scalar_prefetch=0,
        grid=(nb, ns),
        in_specs=[
            pl.BlockSpec((TB, THW, C), lambda b, s: (b, s, 0)),  # x stream
            const((2, C)),                                       # BN0 scale/shift
            const((C, DF)), const((DF, DF)), const((1, DF)),     # fused fc1/fc2
            const((DF, n_pad)),                                  # classifier
        ],
        out_specs=(
            pl.BlockSpec((TB, C), lambda b, s: (b, 0)),
            pl.BlockSpec((TB, DF), lambda b, s: (b, 0)),
            pl.BlockSpec((TB, n_pad), lambda b, s: (b, 0)),
        ),
        scratch_shapes=[pltpu.VMEM((TB, C), jnp.float32)],
    )

    # VMEM plan: double-buffered x tile + weights (bf16) + output tiles,
    # capped at ~60% of this generation's physical VMEM (v7x = 64 MiB part).
    wbytes = (packed['w1'].dtype.itemsize * (C * DF + DF * DF + DF * n_pad)
              + 4 * (DF + 2 * C))
    wgt_mult = 1 if single_buffer_weights else 2
    x_tile_bytes = 2 * TB * THW * C * itemsize
    out_tile_bytes = 2 * 4 * TB * (C + DF + n_pad)
    need = x_tile_bytes + wgt_mult * wbytes + out_tile_bytes + 4 * TB * C + (4 << 20)
    try:
        vmem_cap = int(pltpu.get_tpu_info().vmem_capacity_bytes)
    except Exception:
        vmem_cap = 128 << 20
    vmem_limit = int(max(16 << 20, min(int(0.6 * vmem_cap), need)))

    feat, fcat, lcat = pl.pallas_call(
        kernel,
        out_shape=out_shape,
        grid_spec=grid_spec,
        compiler_params=pltpu.CompilerParams(
            dimension_semantics=("parallel", "arbitrary"),
            vmem_limit_bytes=vmem_limit),
    )(x_r, packed['bn0'], packed['w1'], packed['w2'], packed['b2'],
      packed['wc'])

    # Split the fused outputs back into per-head tensors (layout plumbing).
    d0, d1, d2 = dims
    n0, n1, n2 = ncls
    feat_g = fcat[:, :d0]
    feat_v = fcat[:, d0:d0 + d1]
    feat_c = fcat[:, d0 + d1:d0 + d1 + d2]
    logit_g = lcat[:, :n0]
    logit_v = lcat[:, n0:n0 + n1]
    logit_c = lcat[:, n0 + n1:n0 + n1 + n2]
    return feat, feat_g, logit_g, feat_v, logit_v, feat_c, logit_c


# --------------------------------------------------------------------------
# Pure-JAX reference (direct port of MultiHeadV4.forward, eval-mode BN)
# --------------------------------------------------------------------------
def multihead_v4_reference(x_nhwc, params, eps=1e-5):
    xf = x_nhwc.astype(jnp.float32)
    feat = jnp.mean(xf, axis=(1, 2))                    # AdaptiveAvgPool2d(1)

    def bn(v, p):
        s = p['gamma'] / jnp.sqrt(p['var'] + eps)
        return v * s + (p['beta'] - p['mean'] * s)

    x_bn = bn(feat, params['bn0'])
    outs = [x_bn]
    for h in params['heads']:
        a = jnp.maximum(x_bn @ h['w1'], 0.0)            # Linear(no bias) -> ReLU
        a = bn(a, h['bn1'])                             # BatchNorm1d
        f = bn(a @ h['w2'], h['bn2'])                   # Linear(no bias) -> BN
        outs += [f, f @ h['wc']]                        # classifier (no bias)
    return tuple(outs)


# --------------------------------------------------------------------------
# Demo
# --------------------------------------------------------------------------
if __name__ == "__main__":
    key = jax.random.PRNGKey(0)
    kx, kp = jax.random.split(key)

    # Small deterministic stand-in for the backbone feature map: channels-last
    # and bf16 straight from the "producer" (no wrapper relayout/cast pass).
    B, H, W, C = 2, 16, 16, 4
    x = jax.random.normal(kx, (B, H, W, C), jnp.float32).astype(jnp.bfloat16)

    params = init_multihead_v4_params(kp, C, dims=(256, 64, 64),
                                      n_classes=(168, 11, 7))
    packed = pack_multihead_v4_params(params)
    ref = multihead_v4_reference(x, params)

    # Config 1: aligned spatial tiling (2 accumulation steps).
    outs_a = jax.block_until_ready(
        multihead_v4_forward(x, packed, max_spatial_tile=128))
    # Config 2: ragged spatial tiling (exercises the in-kernel mask path).
    outs_b = jax.block_until_ready(
        multihead_v4_forward(x, packed, max_spatial_tile=96))

    names = ("feat", "feat_g", "logit_g", "feat_v", "logit_v", "feat_c", "logit_c")
    for outs in (outs_a, outs_b):
        for name, got, want in zip(names, outs, ref):
            assert got.shape == want.shape, (name, got.shape, want.shape)
            err = float(jnp.max(jnp.abs(got.astype(jnp.float32) - want)))
            assert err < 5e-2, (name, err)

    feat, feat_g, logit_g, feat_v, logit_v, feat_c, logit_c = outs_a
    assert feat.shape == (B, C)
    assert feat_g.shape == (B, 256) and logit_g.shape == (B, 168)
    assert feat_v.shape == (B, 64) and logit_v.shape == (B, 11)
    assert feat_c.shape == (B, 64) and logit_c.shape == (B, 7)

    # Eval-mode BengaliSEResNeXt50V4.forward returns (logit_g, logit_v, logit_c).
    _ = (logit_g, logit_v, logit_c)

    print("KERNEL_OK")
</pallas_src>

<mosaic_0001>
module attributes {stable_mosaic.version = 11 : i64} {
  func.func @_multihead_v4_kernel(%arg0: i32, %arg1: i32, %arg2: memref<2x128x4xbf16, #tpu.memory_space<vmem>>, %arg3: memref<2x4xf32, #tpu.memory_space<vmem>>, %arg4: memref<4x384xbf16, #tpu.memory_space<vmem>>, %arg5: memref<384x384xbf16, #tpu.memory_space<vmem>>, %arg6: memref<1x384xf32, #tpu.memory_space<vmem>>, %arg7: memref<384x256xbf16, #tpu.memory_space<vmem>>, %arg8: memref<2x4xf32, #tpu.memory_space<vmem>>, %arg9: memref<2x384xf32, #tpu.memory_space<vmem>>, %arg10: memref<2x256xf32, #tpu.memory_space<vmem>>, %arg11: memref<2x4xf32, #tpu.memory_space<vmem>>) attributes {dimension_semantics = [#tpu.dimension_semantics<parallel>, #tpu.dimension_semantics<arbitrary>], iteration_bounds = array<i64: 1, 2>, scalar_prefetch = 0 : i64, scratch_operands = 1 : i64, tpu.core_type = #tpu.core_type<tc>, window_params = [{transform_indices = @transform_0, window_bounds = array<i64: 2, 128, 4>}, {pipeline_mode = #tpu.pipeline_mode<synchronous>, transform_indices = @transform_1, window_bounds = array<i64: 2, 4>}, {pipeline_mode = #tpu.pipeline_mode<synchronous>, transform_indices = @transform_2, window_bounds = array<i64: 4, 384>}, {pipeline_mode = #tpu.pipeline_mode<synchronous>, transform_indices = @transform_3, window_bounds = array<i64: 384, 384>}, {pipeline_mode = #tpu.pipeline_mode<synchronous>, transform_indices = @transform_4, window_bounds = array<i64: 1, 384>}, {pipeline_mode = #tpu.pipeline_mode<synchronous>, transform_indices = @transform_5, window_bounds = array<i64: 384, 256>}, {transform_indices = @transform_6, window_bounds = array<i64: 2, 4>}, {transform_indices = @transform_7, window_bounds = array<i64: 2, 384>}, {transform_indices = @transform_8, window_bounds = array<i64: 2, 256>}]} {
    %c0_i32 = arith.constant 0 : i32
    %0 = arith.cmpi eq, %arg1, %c0_i32 : i32
    %1 = arith.extui %0 : i1 to i32
    %c0_i32_0 = arith.constant 0 : i32
    %2 = arith.cmpi ne, %1, %c0_i32_0 : i32
    scf.if %2 {
      %cst_8 = arith.constant 0.000000e+00 : f32
      %12 = vector.broadcast %cst_8 : f32 to vector<2x4xf32>
      %c0_9 = arith.constant 0 : index
      %c0_10 = arith.constant 0 : index
      %13 = vector.load %arg11[%c0_9, %c0_10] : memref<2x4xf32, #tpu.memory_space<vmem>>, vector<2x4xf32>
      tpu.vector_store %arg11[%c0_9, %c0_10], %12 {strides = array<i32>} : memref<2x4xf32, #tpu.memory_space<vmem>>, vector<2x4xf32>,
    } else {
    }
    %c0 = arith.constant 0 : index
    %c0_1 = arith.constant 0 : index
    %c0_2 = arith.constant 0 : index
    %3 = vector.load %arg2[%c0, %c0_1, %c0_2] : memref<2x128x4xbf16, #tpu.memory_space<vmem>>, vector<2x128x4xbf16>
    %4 = arith.extf %3 : vector<2x128x4xbf16> to vector<2x128x4xf32>
    %c0_3 = arith.constant 0 : index
    %c0_4 = arith.constant 0 : index
    %5 = vector.load %arg11[%c0_3, %c0_4] : memref<2x4xf32, #tpu.memory_space<vmem>>, vector<2x4xf32>
    %cst = arith.constant dense<0.000000e+00> : vector<2x4xf32>
    %6 = vector.multi_reduction <add>, %4, %cst [1] : vector<2x128x4xf32> to vector<2x4xf32>
    %7 = arith.addf %5, %6 : vector<2x4xf32>
    %c0_5 = arith.constant 0 : index
    %c0_6 = arith.constant 0 : index
    %8 = vector.load %arg11[%c0_5, %c0_6] : memref<2x4xf32, #tpu.memory_space<vmem>>, vector<2x4xf32>
    tpu.vector_store %arg11[%c0_5, %c0_6], %7 {strides = array<i32>} : memref<2x4xf32, #tpu.memory_space<vmem>>, vector<2x4xf32>,
    %c1_i32 = arith.constant 1 : i32
    %9 = arith.cmpi eq, %arg1, %c1_i32 : i32
    %10 = arith.extui %9 : i1 to i32
    %c0_i32_7 = arith.constant 0 : i32
    %11 = arith.cmpi ne, %10, %c0_i32_7 : i32
    scf.if %11 {
      %c0_8 = arith.constant 0 : index
      %c0_9 = arith.constant 0 : index
      %12 = vector.load %arg3[%c0_8, %c0_9] : memref<2x4xf32, #tpu.memory_space<vmem>>, vector<2x4xf32>
      %c0_10 = arith.constant 0 : index
      %c0_11 = arith.constant 0 : index
      %13 = vector.load %arg11[%c0_10, %c0_11] : memref<2x4xf32, #tpu.memory_space<vmem>>, vector<2x4xf32>
      %cst_12 = arith.constant 3.906250e-03 : f32
      %14 = vector.broadcast %cst_12 : f32 to vector<2x4xf32>
      %15 = arith.mulf %13, %14 : vector<2x4xf32>
      %16 = vector.extract_strided_slice %12 {offsets = [0, 0], sizes = [1, 4], strides = [1, 1]} : vector<2x4xf32> to vector<1x4xf32>
      %17 = vector.broadcast %16 : vector<1x4xf32> to vector<2x4xf32>
      %18 = arith.mulf %15, %17 : vector<2x4xf32>
      %19 = vector.extract_strided_slice %12 {offsets = [1, 0], sizes = [1, 4], strides = [1, 1]} : vector<2x4xf32> to vector<1x4xf32>
      %20 = vector.broadcast %19 : vector<1x4xf32> to vector<2x4xf32>
      %21 = arith.addf %18, %20 : vector<2x4xf32>
      %c0_13 = arith.constant 0 : index
      %c0_14 = arith.constant 0 : index
      %22 = vector.load %arg8[%c0_13, %c0_14] : memref<2x4xf32, #tpu.memory_space<vmem>>, vector<2x4xf32>
      tpu.vector_store %arg8[%c0_13, %c0_14], %21 {strides = array<i32>} : memref<2x4xf32, #tpu.memory_space<vmem>>, vector<2x4xf32>,
      %23 = arith.truncf %21 : vector<2x4xf32> to vector<2x4xbf16>
      %c0_15 = arith.constant 0 : index
      %c0_16 = arith.constant 0 : index
      %24 = vector.load %arg4[%c0_15, %c0_16] : memref<4x384xbf16, #tpu.memory_space<vmem>>, vector<4x384xbf16>
      %cst_17 = arith.constant dense<0.000000e+00> : vector<2x384xf32>
      %25 = tpu.matmul %23, %24, %cst_17 {dimension_numbers = #tpu.dot_dimension_numbers<[1], [0], [0], [1], [0, 0, 1, 1], [], []>} : vector<2x4xbf16>, vector<4x384xbf16>, vector<2x384xf32> -> vector<2x384xf32>
      %cst_18 = arith.constant 0.000000e+00 : f32
      %26 = vector.broadcast %cst_18 : f32 to vector<2x384xf32>
      %27 = arith.maximumf %25, %26 : vector<2x384xf32>
      %28 = arith.truncf %27 : vector<2x384xf32> to vector<2x384xbf16>
      %c0_19 = arith.constant 0 : index
      %c0_20 = arith.constant 0 : index
      %29 = vector.load %arg5[%c0_19, %c0_20] : memref<384x384xbf16, #tpu.memory_space<vmem>>, vector<384x384xbf16>
      %cst_21 = arith.constant dense<0.000000e+00> : vector<2x384xf32>
      %30 = tpu.matmul %28, %29, %cst_21 {dimension_numbers = #tpu.dot_dimension_numbers<[1], [0], [0], [1], [0, 0, 1, 1], [], []>} : vector<2x384xbf16>, vector<384x384xbf16>, vector<2x384xf32> -> vector<2x384xf32>
      %c0_22 = arith.constant 0 : index
      %c0_23 = arith.constant 0 : index
      %31 = vector.load %arg6[%c0_22, %c0_23] : memref<1x384xf32, #tpu.memory_space<vmem>>, vector<1x384xf32>
      %32 = vector.broadcast %31 : vector<1x384xf32> to vector<2x384xf32>
      %33 = arith.addf %30, %32 : vector<2x384xf32>
      %c0_24 = arith.constant 0 : index
      %c0_25 = arith.constant 0 : index
      %34 = vector.load %arg9[%c0_24, %c0_25] : memref<2x384xf32, #tpu.memory_space<vmem>>, vector<2x384xf32>
      tpu.vector_store %arg9[%c0_24, %c0_25], %33 {strides = array<i32>} : memref<2x384xf32, #tpu.memory_space<vmem>>, vector<2x384xf32>,
      %35 = arith.truncf %33 : vector<2x384xf32> to vector<2x384xbf16>
      %c0_26 = arith.constant 0 : index
      %c0_27 = arith.constant 0 : index
      %36 = vector.load %arg7[%c0_26, %c0_27] : memref<384x256xbf16, #tpu.memory_space<vmem>>, vector<384x256xbf16>
      %cst_28 = arith.constant dense<0.000000e+00> : vector<2x256xf32>
      %37 = tpu.matmul %35, %36, %cst_28 {dimension_numbers = #tpu.dot_dimension_numbers<[1], [0], [0], [1], [0, 0, 1, 1], [], []>} : vector<2x384xbf16>, vector<384x256xbf16>, vector<2x256xf32> -> vector<2x256xf32>
      %c0_29 = arith.constant 0 : index
      %c0_30 = arith.constant 0 : index
      %38 = vector.load %arg10[%c0_29, %c0_30] : memref<2x256xf32, #tpu.memory_space<vmem>>, vector<2x256xf32>
      tpu.vector_store %arg10[%c0_29, %c0_30], %37 {strides = array<i32>} : memref<2x256xf32, #tpu.memory_space<vmem>>, vector<2x256xf32>,
    } else {
    }
    return
  }
  func.func @transform_0(%arg0: i32, %arg1: i32) -> (i32, i32, i32) {
    %c0_i32 = arith.constant 0 : i32
    %c0_i32_0 = arith.constant 0 : i32
    return %arg0, %arg1, %c0_i32 : i32, i32, i32
  }
  func.func @transform_1(%arg0: i32, %arg1: i32) -> (i32, i32) {
    %c0_i32 = arith.constant 0 : i32
    %c0_i32_0 = arith.constant 0 : i32
    %c0_i32_1 = arith.constant 0 : i32
    return %c0_i32, %c0_i32_0 : i32, i32
  }
  func.func @transform_2(%arg0: i32, %arg1: i32) -> (i32, i32) {
    %c0_i32 = arith.constant 0 : i32
    %c0_i32_0 = arith.constant 0 : i32
    %c0_i32_1 = arith.constant 0 : i32
    return %c0_i32, %c0_i32_0 : i32, i32
  }
  func.func @transform_3(%arg0: i32, %arg1: i32) -> (i32, i32) {
    %c0_i32 = arith.constant 0 : i32
    %c0_i32_0 = arith.constant 0 : i32
    %c0_i32_1 = arith.constant 0 : i32
    return %c0_i32, %c0_i32_0 : i32, i32
  }
  func.func @transform_4(%arg0: i32, %arg1: i32) -> (i32, i32) {
    %c0_i32 = arith.constant 0 : i32
    %c0_i32_0 = arith.constant 0 : i32
    %c0_i32_1 = arith.constant 0 : i32
    return %c0_i32, %c0_i32_0 : i32, i32
  }
  func.func @transform_5(%arg0: i32, %arg1: i32) -> (i32, i32) {
    %c0_i32 = arith.constant 0 : i32
    %c0_i32_0 = arith.constant 0 : i32
    %c0_i32_1 = arith.constant 0 : i32
    return %c0_i32, %c0_i32_0 : i32, i32
  }
  func.func @transform_6(%arg0: i32, %arg1: i32) -> (i32, i32) {
    %c0_i32 = arith.constant 0 : i32
    %c0_i32_0 = arith.constant 0 : i32
    return %arg0, %c0_i32 : i32, i32
  }
  func.func @transform_7(%arg0: i32, %arg1: i32) -> (i32, i32) {
    %c0_i32 = arith.constant 0 : i32
    %c0_i32_0 = arith.constant 0 : i32
    return %arg0, %c0_i32 : i32, i32
  }
  func.func @transform_8(%arg0: i32, %arg1: i32) -> (i32, i32) {
    %c0_i32 = arith.constant 0 : i32
    %c0_i32_0 = arith.constant 0 : i32
    return %arg0, %c0_i32 : i32, i32
  }
}

</mosaic_0001>

<llo_original>
// kernel: tpu_custom_call.1
$region0: #{tpu_custom_call.1}
  #allocation0 [shape = 'u32[]', space=smem, size = 0x4, offset = 0x4, fixed_abs, tag = 'smem constant byte address 0x4 - core index']
  #allocation1 [shape = 'u32[144,128]{1,0:T(1,128)}', space=vmem, size = 0x12000, scoped, tag = 'internal scratch']
  #allocation2 [shape = 'f32[2,4]{1,0:T(2,128)}', space=vmem, size = 0x400, scoped, tag = 'scratch operand']
  %s0 = inlined_call_operand.vmem [shape: bf16[2,256,4], index: 0, kind: input, shape index: {}]
  %s1 = inlined_call_operand.vmem [shape: f32[2,4], index: 1, kind: input, shape index: {}]
  %s2 = inlined_call_operand.vmem [shape: bf16[4,384], index: 2, kind: input, shape index: {}]
  %s3 = inlined_call_operand.hbm [shape: bf16[384,384], index: 3, kind: input, shape index: {}]
  %s4 = inlined_call_operand.vmem [shape: f32[1,384], index: 4, kind: input, shape index: {}]
  %s5 = inlined_call_operand.hbm [shape: bf16[384,256], index: 5, kind: input, shape index: {}]
  %s6 = inlined_call_operand.hbm [shape: f32[2,4], index: 6, kind: output, shape index: {0}]
  %s7 = inlined_call_operand.hbm [shape: f32[2,384], index: 7, kind: output, shape index: {1}]
  %s8 = inlined_call_operand.hbm [shape: f32[2,256], index: 8, kind: output, shape index: {2}]
  %9 = xla_tuple %s6, %s7, %s8
  %s10 = sld [smem:[#allocation0]]
  $region130: #{tpu_custom_call.1} parent=0
    _
  %s12 = ssub.s32 1, %s10
  %s13 = scalar_select 0, %s12, %s10
  $region1: #{tpu_custom_call.1} parent=0
    #allocation3 [shape = 'u8[131072]{0}', space=vmem, size = 0x20000, scoped, tag = 'input window, operand 0']
    #allocation4 [shape = 'u8[294912]{0}', space=vmem, size = 0x48000, scoped, tag = 'input window, operand 3, single buffered']
    #allocation5 [shape = 's32[2]{0}', space=sflag, size = 0x8, scoped, tag = 'scoped memory for tpu_custom_call.1']
    #allocation6 [shape = 's32[2]{0}', space=sflag, size = 0x8, scoped, tag = 'scoped memory for tpu_custom_call.1']
    #allocation7 [shape = 'u8[196608]{0}', space=vmem, size = 0x30000, scoped, tag = 'input window, operand 5, single buffered']
    #allocation8 [shape = 's32[1]{0}', space=sflag, size = 0x4, scoped, tag = 'scoped memory for tpu_custom_call.1']
    #allocation9 [shape = 'u8[1024]{0}', space=vmem, size = 0x400, scoped, tag = 'output window, operand 0, single buffered']
    #allocation10 [shape = 'u8[3072]{0}', space=vmem, size = 0xc00, scoped, tag = 'output window, operand 1, single buffered']
    #allocation11 [shape = 's32[1]{0}', space=sflag, size = 0x4, scoped, tag = 'scoped memory for tpu_custom_call.1']
    #allocation12 [shape = 'u8[2048]{0}', space=vmem, size = 0x800, scoped, tag = 'output window, operand 2, single buffered']
    %14 = vsyncpa [#allocation5], 0
    %15 = vsyncpa [#allocation8], 0
    %16 = vsyncpa [#allocation6], 0
    %17 = vsyncpa [#allocation11], 0
    loop: start=0, step=1, limit=4
    $region2: #{tpu_custom_call.1} parent=1 // loop_pre_header
      _
    $region3: #{tpu_custom_call.1} parent=1 // loop_header
      %s19 = sphi 0, %s23
      %p20 = scmp.ge.s32.totalorder %s19, 4
      %s26 = sphi 0, %s38
      %s27 = sphi 0, %s34
      %s28 = sphi 0, %s26
      %s29 = sphi 0, %s27
      %s30 = sphi 0, %s28
      %s31 = sphi 0, %s29
      %s43 = sphi 0, %s45
      %s46 = sphi 0, %s43
      %s47 = sphi 0, %s46
      %s63 = sphi 0, %s47
      %s67 = sphi 0, %s67
      %s69 = sphi 0, %s67
      %s70 = sphi 0, %s69
      %s84 = sphi 0, %s70
      %s88 = sphi 0, %s88
      %s90 = sphi 0, %s88
      %s91 = sphi 0, %s90
      %s105 = sphi 0, %s91
      %s109 = sphi 0, %s109
      %s111 = sphi 0, %s109
      %s112 = sphi 0, %s111
      %s126 = sphi 0, %s112
      %s130 = sphi 0, %s130
      %s132 = sphi 0, %s130
      %s133 = sphi 0, %s132
      %s147 = sphi 0, %s133
      %s151 = sphi 0, %s151
      %s153 = sphi 0, %s151
      %s154 = sphi 0, %s153
      %s168 = sphi 0, %s154
      %s174 = sphi 0, %s176
      %s177 = sphi 0, %s174
      %s178 = sphi 0, %s177
      %s194 = sphi 0, %s178
      %s200 = sphi 0, %s202
      %s203 = sphi 0, %s200
      %s204 = sphi 0, %s203
      %s220 = sphi 0, %s204
      %s226 = sphi 0, %s228
      %s229 = sphi 0, %s226
      %s230 = sphi 0, %s229
      %s246 = sphi 0, %s230
    $region4: #{tpu_custom_call.1} parent=1 // loop_header_branch
      %22 = sbr.rel (%p20) target = $region8
    $region5: #{tpu_custom_call.1} parent=1 // loop_body
      %s24 = ssub.s32 %s19, 1
      %s25 = ssub.s32 %s19, 2
      %s32 = sadd.s32 1, %s27
      %p33 = scmp.ge.s32.totalorder %s32, 2
      %s34 = scalar_select %p33, 0, %s32
      %s35 = sadd.s32 1, %s26
      %s36 = scalar_select %p33, %s35, %s26
      %p37 = scmp.ge.s32.totalorder %s36, 1
      %s38 = scalar_select %p37, 0, %s36
      %s39 = ssub.s32 %s26, %s38
      %s40 = ssub.s32 %s27, %s34
      %s41 = sor.u32 %s39, %s40
      %p42 = scmp.eq.s32.totalorder %s41, 0
      %s44 = sadd.s32 %s43, 1
      %s45 = scalar_select %p42, %s43, %s44
      %p48 = pneg %p42
      %p49 = scmp.eq.s32.totalorder %s19, 1
      %p50 = por %p48, %p49
      %p51 = scmp.ne.s32.totalorder %s43, %s46
      %p52 = scmp.eq.s32.totalorder %s19, 0
      %p53 = por %p51, %p52
      %p54 = scmp.ne.s32.totalorder %s43, %s46
      %p55 = scmp.eq.s32.totalorder %s24, 1
      %p56 = por %p54, %p55
      %p57 = scmp.ne.s32.totalorder %s46, %s47
      %p58 = scmp.eq.s32.totalorder %s24, 0
      %p59 = por %p57, %p58
      %p60 = scmp.ne.s32.totalorder %s46, %s47
      %p61 = scmp.eq.s32.totalorder %s25, 1
      %p62 = por %p60, %p61
      %p64 = scmp.ne.s32.totalorder %s47, %s63
      %p65 = scmp.eq.s32.totalorder %s25, 0
      %p66 = por %p64, %p65
      %s68 = sadd.s32 %s67, 1
      %p71 = scmp.eq.s32.totalorder %s19, 1
      %p72 = scmp.ne.s32.totalorder %s67, %s69
      %p73 = scmp.eq.s32.totalorder %s19, 0
      %p74 = por %p72, %p73
      %p75 = scmp.ne.s32.totalorder %s67, %s69
      %p76 = scmp.eq.s32.totalorder %s24, 1
      %p77 = por %p75, %p76
      %p78 = scmp.ne.s32.totalorder %s69, %s70
      %p79 = scmp.eq.s32.totalorder %s24, 0
      %p80 = por %p78, %p79
      %p81 = scmp.ne.s32.totalorder %s69, %s70
      %p82 = scmp.eq.s32.totalorder %s25, 1
      %p83 = por %p81, %p82
      %p85 = scmp.ne.s32.totalorder %s70, %s84
      %p86 = scmp.eq.s32.totalorder %s25, 0
      %p87 = por %p85, %p86
      %s89 = sadd.s32 %s88, 1
      %p92 = scmp.eq.s32.totalorder %s19, 1
      %p93 = scmp.ne.s32.totalorder %s88, %s90
      %p94 = scmp.eq.s32.totalorder %s19, 0
      %p95 = por %p93, %p94
      %p96 = scmp.ne.s32.totalorder %s88, %s90
      %p97 = scmp.eq.s32.totalorder %s24, 1
      %p98 = por %p96, %p97
      %p99 = scmp.ne.s32.totalorder %s90, %s91
      %p100 = scmp.eq.s32.totalorder %s24, 0
      %p101 = por %p99, %p100
      %p102 = scmp.ne.s32.totalorder %s90, %s91
      %p103 = scmp.eq.s32.totalorder %s25, 1
      %p104 = por %p102, %p103
      %p106 = scmp.ne.s32.totalorder %s91, %s105
      %p107 = scmp.eq.s32.totalorder %s25, 0
      %p108 = por %p106, %p107
      %s110 = sadd.s32 %s109, 1
      %p113 = scmp.eq.s32.totalorder %s19, 1
      %p114 = scmp.ne.s32.totalorder %s109, %s111
      %p115 = scmp.eq.s32.totalorder %s19, 0
      %p116 = por %p114, %p115
      %p117 = scmp.ne.s32.totalorder %s109, %s111
      %p118 = scmp.eq.s32.totalorder %s24, 1
      %p119 = por %p117, %p118
      %p120 = scmp.ne.s32.totalorder %s111, %s112
      %p121 = scmp.eq.s32.totalorder %s24, 0
      %p122 = por %p120, %p121
      %p123 = scmp.ne.s32.totalorder %s111, %s112
      %p124 = scmp.eq.s32.totalorder %s25, 1
      %p125 = por %p123, %p124
      %p127 = scmp.ne.s32.totalorder %s112, %s126
      %p128 = scmp.eq.s32.totalorder %s25, 0
      %p129 = por %p127, %p128
      %s131 = sadd.s32 %s130, 1
      %p134 = scmp.eq.s32.totalorder %s19, 1
      %p135 = scmp.ne.s32.totalorder %s130, %s132
      %p136 = scmp.eq.s32.totalorder %s19, 0
      %p137 = por %p135, %p136
      %p138 = scmp.ne.s32.totalorder %s130, %s132
      %p139 = scmp.eq.s32.totalorder %s24, 1
      %p140 = por %p138, %p139
      %p141 = scmp.ne.s32.totalorder %s132, %s133
      %p142 = scmp.eq.s32.totalorder %s24, 0
      %p143 = por %p141, %p142
      %p144 = scmp.ne.s32.totalorder %s132, %s133
      %p145 = scmp.eq.s32.totalorder %s25, 1
      %p146 = por %p144, %p145
      %p148 = scmp.ne.s32.totalorder %s133, %s147
      %p149 = scmp.eq.s32.totalorder %s25, 0
      %p150 = por %p148, %p149
      %s152 = sadd.s32 %s151, 1
      %p155 = scmp.eq.s32.totalorder %s19, 1
      %p156 = scmp.ne.s32.totalorder %s151, %s153
      %p157 = scmp.eq.s32.totalorder %s19, 0
      %p158 = por %p156, %p157
      %p159 = scmp.ne.s32.totalorder %s151, %s153
      %p160 = scmp.eq.s32.totalorder %s24, 1
      %p161 = por %p159, %p160
      %p162 = scmp.ne.s32.totalorder %s153, %s154
      %p163 = scmp.eq.s32.totalorder %s24, 0
      %p164 = por %p162, %p163
      %p165 = scmp.ne.s32.totalorder %s153, %s154
      %p166 = scmp.eq.s32.totalorder %s25, 1
      %p167 = por %p165, %p166
      %p169 = scmp.ne.s32.totalorder %s154, %s168
      %p170 = scmp.eq.s32.totalorder %s25, 0
      %p171 = por %p169, %p170
      %s172 = ssub.s32 %s26, %s38
      %p173 = scmp.eq.s32.totalorder %s172, 0
      %s175 = sadd.s32 %s174, 1
      %s176 = scalar_select %p173, %s174, %s175
      %p179 = pneg %p173
      %p180 = scmp.eq.s32.totalorder %s19, 1
      %p181 = por %p179, %p180
      %p182 = scmp.ne.s32.totalorder %s174, %s177
      %p183 = scmp.eq.s32.totalorder %s19, 0
      %p184 = por %p182, %p183
      %p185 = scmp.ne.s32.totalorder %s174, %s177
      %p186 = scmp.eq.s32.totalorder %s24, 1
      %p187 = por %p185, %p186
      %p188 = scmp.ne.s32.totalorder %s177, %s178
      %p189 = scmp.eq.s32.totalorder %s24, 0
      %p190 = por %p188, %p189
      %p191 = scmp.ne.s32.totalorder %s177, %s178
      %p192 = scmp.eq.s32.totalorder %s25, 1
      %p193 = por %p191, %p192
      %p195 = scmp.ne.s32.totalorder %s178, %s194
      %p196 = scmp.eq.s32.totalorder %s25, 0
      %p197 = por %p195, %p196
      %s198 = ssub.s32 %s26, %s38
      %p199 = scmp.eq.s32.totalorder %s198, 0
      %s201 = sadd.s32 %s200, 1
      %s202 = scalar_select %p199, %s200, %s201
      %p205 = pneg %p199
      %p206 = scmp.eq.s32.totalorder %s19, 1
      %p207 = por %p205, %p206
      %p208 = scmp.ne.s32.totalorder %s200, %s203
      %p209 = scmp.eq.s32.totalorder %s19, 0
      %p210 = por %p208, %p209
      %p211 = scmp.ne.s32.totalorder %s200, %s203
      %p212 = scmp.eq.s32.totalorder %s24, 1
      %p213 = por %p211, %p212
      %p214 = scmp.ne.s32.totalorder %s203, %s204
      %p215 = scmp.eq.s32.totalorder %s24, 0
      %p216 = por %p214, %p215
      %p217 = scmp.ne.s32.totalorder %s203, %s204
      %p218 = scmp.eq.s32.totalorder %s25, 1
      %p219 = por %p217, %p218
      %p221 = scmp.ne.s32.totalorder %s204, %s220
      %p222 = scmp.eq.s32.totalorder %s25, 0
      %p223 = por %p221, %p222
      %s224 = ssub.s32 %s26, %s38
      %p225 = scmp.eq.s32.totalorder %s224, 0
      %s227 = sadd.s32 %s226, 1
      %s228 = scalar_select %p225, %s226, %s227
      %p231 = pneg %p225
      %p232 = scmp.eq.s32.totalorder %s19, 1
      %p233 = por %p231, %p232
      %p234 = scmp.ne.s32.totalorder %s226, %s229
      %p235 = scmp.eq.s32.totalorder %s19, 0
      %p236 = por %p234, %p235
      %p237 = scmp.ne.s32.totalorder %s226, %s229
      %p238 = scmp.eq.s32.totalorder %s24, 1
      %p239 = por %p237, %p238
      %p240 = scmp.ne.s32.totalorder %s229, %s230
      %p241 = scmp.eq.s32.totalorder %s24, 0
      %p242 = por %p240, %p241
      %p243 = scmp.ne.s32.totalorder %s229, %s230
      %p244 = scmp.eq.s32.totalorder %s25, 1
      %p245 = por %p243, %p244
      %p247 = scmp.ne.s32.totalorder %s230, %s246
      %p248 = scmp.eq.s32.totalorder %s25, 0
      %p249 = por %p247, %p248
      %p250 = scmp.le.s32.totalorder 1, %s19
      %p251 = scmp.lt.s32.totalorder %s19, 3
      %p252 = pnand %p250, %p251
      %p253 = pneg %p252
      // Predicated region
      $region9: #{tpu_custom_call.1} parent=5 // pred_check
        _
      $region10: #{tpu_custom_call.1} parent=5 // pred_check_branch
        %255 = sbr.rel (%p252) target = $region12
      $region11: #{tpu_custom_call.1} parent=5 // pred_region
        %s256 = ssub.s32 %s19, 1
        // Predicated region
        $region13: #{tpu_custom_call.1} parent=11 // pred_check
          %p257 = pneg %p80
        $region14: #{tpu_custom_call.1} parent=11 // pred_check_branch
          %259 = sbr.rel (%p257) target = $region16
        $region15: #{tpu_custom_call.1} parent=11 // pred_region
          _
        $region16: #{tpu_custom_call.1} parent=11 // pred_fallthru
          _
        // Predicated region
        $region17: #{tpu_custom_call.1} parent=11 // pred_check
          %p260 = pneg %p101
        $region18: #{tpu_custom_call.1} parent=11 // pred_check_branch
          %262 = sbr.rel (%p260) target = $region20
        $region19: #{tpu_custom_call.1} parent=11 // pred_region
          _
        $region20: #{tpu_custom_call.1} parent=11 // pred_fallthru
          _
        // Predicated region
        $region21: #{tpu_custom_call.1} parent=11 // pred_check
          %p263 = pneg %p122
        $region22: #{tpu_custom_call.1} parent=11 // pred_check_branch
          %265 = sbr.rel (%p263) target = $region24
        $region23: #{tpu_custom_call.1} parent=11 // pred_region
          %s267 = ssub.s32 9216, 9216
          %268 = vsyncadd [#allocation5], %s267
          %s269 = sshll.u32 [#allocation4], 4
          %s270 = int_to_ptr.vmem [resolvable:$true] %s269
          %275 = dma.hbm_to_vmem [thread:$0]  %s3, 9216, %s270, [#allocation5], 192, 192, 12
        $region24: #{tpu_custom_call.1} parent=11 // pred_fallthru
          _
        // Predicated region
        $region25: #{tpu_custom_call.1} parent=11 // pred_check
          %p276 = pneg %p143
        $region26: #{tpu_custom_call.1} parent=11 // pred_check_branch
          %278 = sbr.rel (%p276) target = $region28
        $region27: #{tpu_custom_call.1} parent=11 // pred_region
          _
        $region28: #{tpu_custom_call.1} parent=11 // pred_fallthru
          _
        // Predicated region
        $region29: #{tpu_custom_call.1} parent=11 // pred_check
          %p279 = pneg %p164
        $region30: #{tpu_custom_call.1} parent=11 // pred_check_branch
          %281 = sbr.rel (%p279) target = $region32
        $region31: #{tpu_custom_call.1} parent=11 // pred_region
          %s283 = ssub.s32 6144, 6144
          %284 = vsyncadd [#allocation8], %s283
          %s285 = sshll.u32 [#allocation7], 4
          %s286 = int_to_ptr.vmem [resolvable:$true] %s285
          %291 = dma.hbm_to_vmem [thread:$0]  %s5, 6144, %s286, [#allocation8], 128, 128, 8
        $region32: #{tpu_custom_call.1} parent=11 // pred_fallthru
          _
      $region12: #{tpu_custom_call.1} parent=5 // pred_fallthru
        _
      %p292 = scmp.lt.s32.totalorder %s19, 2
      // Predicated region
      $region33: #{tpu_custom_call.1} parent=5 // pred_check
        %p293 = pneg %p292
      $region34: #{tpu_custom_call.1} parent=5 // pred_check_branch
        %295 = sbr.rel (%p293) target = $region36
      $region35: #{tpu_custom_call.1} parent=5 // pred_region
        // Predicated region
        $region37: #{tpu_custom_call.1} parent=35 // pred_check
          %p296 = pneg %p53
        $region38: #{tpu_custom_call.1} parent=35 // pred_check_branch
          %298 = sbr.rel (%p296) target = $region40
        $region39: #{tpu_custom_call.1} parent=35 // pred_region
          %s299 = sand.u32 %s43, 1
          %s300 = sand.u32 %s43, 1
          %s301 = smul.addr %s300, 128
          %s302 = scalar_lea.vmem [#allocation3], %s301
          %s303 = smul.u32 2, %s26
          %s304 = smul.u32 16, %s27
          %s305 = smul.addr %s303, 32
          %s306 = sadd.s32 %s304, %s305
          %s307 = smul.addr %s306, 4
          %s308 = scalar_lea.vmem %s0, %s307
          // Predicated region
          $region41: #{tpu_custom_call.1} parent=39 // pred_check
            _
          $region42: #{tpu_custom_call.1} parent=39 // pred_check_branch
            %310 = sbr.rel (0) target = $region44
          $region43: #{tpu_custom_call.1} parent=39 // pred_region
            // Predicated region
            $region45: #{tpu_custom_call.1} parent=43 // pred_check
              _
            $region46: #{tpu_custom_call.1} parent=43 // pred_check_branch
              %312 = sbr.rel target = $region48
            $region47: #{tpu_custom_call.1} parent=43 // pred_region
              // Predicated region
              $region60: #{tpu_custom_call.1} parent=47 // pred_check
                _
              $region61: #{tpu_custom_call.1} parent=47 // pred_check_branch
                %390 = sbr.rel (0) target = $region63
              $region62: #{tpu_custom_call.1} parent=47 // pred_region
                loop: start=0, step=1, limit=1
                $region64: #{tpu_custom_call.1} parent=62 // loop_pre_header
                  _
                $region65: #{tpu_custom_call.1} parent=62 // loop_header
                  %s392 = sphi 0, %s396
                  %p393 = scmp.ge.s32.totalorder %s392, 1
                  %s397 = sphi %s308, %s308
                  %s398 = sphi %s302, %s302
                $region66: #{tpu_custom_call.1} parent=62 // loop_header_branch
                  %395 = sbr.rel (%p393) target = $region70
                $region67: #{tpu_custom_call.1} parent=62 // loop_body
                  _
                $region68: #{tpu_custom_call.1} parent=62 // loop_footer
                  %s396 = sadd.s32 1, %s392
                $region69: #{tpu_custom_call.1} parent=62 // loop_footer_branch
                  %391 = sbr.rel target = $region65
                $region70: #{tpu_custom_call.1} parent=62 // loop_exit
                  _
                %s400 = ssub.s32 16, 1
                loop: start=0, step=1, limit=1
                $region71: #{tpu_custom_call.1} parent=62 // loop_pre_header
                  _
                $region72: #{tpu_custom_call.1} parent=62 // loop_header
                  %s402 = sphi 0, %s406
                  %p403 = scmp.ge.s32.totalorder %s402, 1
                  %s407 = sphi %s308, %s308
                  %s408 = sphi %s302, %s302
                $region73: #{tpu_custom_call.1} parent=62 // loop_header_branch
                  %405 = sbr.rel (%p403) target = $region77
                $region74: #{tpu_custom_call.1} parent=62 // loop_body
                  %v409 = vld [vmem:[%s407] sm:%s400]
                  %410 = vst [vmem:[%s408] sm:%s400] %v409
                  %v411 = vld [vmem:[%s407 + $0x4] sm:%s400]
                  %412 = vst [vmem:[%s408 + $0x4] sm:%s400] %v411
                  %v413 = vld [vmem:[%s407 + $0x8] sm:%s400]
                  %414 = vst [vmem:[%s408 + $0x8] sm:%s400] %v413
                  %v415 = vld [vmem:[%s407 + $0xc] sm:%s400]
                  %416 = vst [vmem:[%s408 + $0xc] sm:%s400] %v415
                  %v417 = vld [vmem:[%s407 + $0x10] sm:%s400]
                  %418 = vst [vmem:[%s408 + $0x10] sm:%s400] %v417
                  %v419 = vld [vmem:[%s407 + $0x14] sm:%s400]
                  %420 = vst [vmem:[%s408 + $0x14] sm:%s400] %v419
                  %v421 = vld [vmem:[%s407 + $0x18] sm:%s400]
                  %422 = vst [vmem:[%s408 + $0x18] sm:%s400] %v421
                  %v423 = vld [vmem:[%s407 + $0x1c] sm:%s400]
                  %424 = vst [vmem:[%s408 + $0x1c] sm:%s400] %v423
                  %v425 = vld [vmem:[%s407 + $0x20] sm:%s400]
                  %426 = vst [vmem:[%s408 + $0x20] sm:%s400] %v425
                  %v427 = vld [vmem:[%s407 + $0x24] sm:%s400]
                  %428 = vst [vmem:[%s408 + $0x24] sm:%s400] %v427
                  %v429 = vld [vmem:[%s407 + $0x28] sm:%s400]
                  %430 = vst [vmem:[%s408 + $0x28] sm:%s400] %v429
                  %v431 = vld [vmem:[%s407 + $0x2c] sm:%s400]
                  %432 = vst [vmem:[%s408 + $0x2c] sm:%s400] %v431
                  %v433 = vld [vmem:[%s407 + $0x30] sm:%s400]
                  %434 = vst [vmem:[%s408 + $0x30] sm:%s400] %v433
                  %v435 = vld [vmem:[%s407 + $0x34] sm:%s400]
                  %436 = vst [vmem:[%s408 + $0x34] sm:%s400] %v435
                  %v437 = vld [vmem:[%s407 + $0x38] sm:%s400]
                  %438 = vst [vmem:[%s408 + $0x38] sm:%s400] %v437
                  %v439 = vld [vmem:[%s407 + $0x3c] sm:%s400]
                  %440 = vst [vmem:[%s408 + $0x3c] sm:%s400] %v439
                  %v441 = vld [vmem:[%s407 + $0x80] sm:%s400]
                  %442 = vst [vmem:[%s408 + $0x40] sm:%s400] %v441
                  %v443 = vld [vmem:[%s407 + $0x84] sm:%s400]
                  %444 = vst [vmem:[%s408 + $0x44] sm:%s400] %v443
                  %v445 = vld [vmem:[%s407 + $0x88] sm:%s400]
                  %446 = vst [vmem:[%s408 + $0x48] sm:%s400] %v445
                  %v447 = vld [vmem:[%s407 + $0x8c] sm:%s400]
                  %448 = vst [vmem:[%s408 + $0x4c] sm:%s400] %v447
                  %v449 = vld [vmem:[%s407 + $0x90] sm:%s400]
                  %450 = vst [vmem:[%s408 + $0x50] sm:%s400] %v449
                  %v451 = vld [vmem:[%s407 + $0x94] sm:%s400]
                  %452 = vst [vmem:[%s408 + $0x54] sm:%s400] %v451
                  %v453 = vld [vmem:[%s407 + $0x98] sm:%s400]
                  %454 = vst [vmem:[%s408 + $0x58] sm:%s400] %v453
                  %v455 = vld [vmem:[%s407 + $0x9c] sm:%s400]
                  %456 = vst [vmem:[%s408 + $0x5c] sm:%s400] %v455
                  %v457 = vld [vmem:[%s407 + $0xa0] sm:%s400]
                  %458 = vst [vmem:[%s408 + $0x60] sm:%s400] %v457
                  %v459 = vld [vmem:[%s407 + $0xa4] sm:%s400]
                  %460 = vst [vmem:[%s408 + $0x64] sm:%s400] %v459
                  %v461 = vld [vmem:[%s407 + $0xa8] sm:%s400]
                  %462 = vst [vmem:[%s408 + $0x68] sm:%s400] %v461
                  %v463 = vld [vmem:[%s407 + $0xac] sm:%s400]
                  %464 = vst [vmem:[%s408 + $0x6c] sm:%s400] %v463
                  %v465 = vld [vmem:[%s407 + $0xb0] sm:%s400]
                  %466 = vst [vmem:[%s408 + $0x70] sm:%s400] %v465
                  %v467 = vld [vmem:[%s407 + $0xb4] sm:%s400]
                  %468 = vst [vmem:[%s408 + $0x74] sm:%s400] %v467
                  %v469 = vld [vmem:[%s407 + $0xb8] sm:%s400]
                  %470 = vst [vmem:[%s408 + $0x78] sm:%s400] %v469
                  %v471 = vld [vmem:[%s407 + $0xbc] sm:%s400]
                  %472 = vst [vmem:[%s408 + $0x7c] sm:%s400] %v471
                $region75: #{tpu_custom_call.1} parent=62 // loop_footer
                  %s406 = sadd.s32 1, %s402
                $region76: #{tpu_custom_call.1} parent=62 // loop_footer_branch
                  %401 = sbr.rel target = $region72
                $region77: #{tpu_custom_call.1} parent=62 // loop_exit
                  _
              $region63: #{tpu_custom_call.1} parent=47 // pred_fallthru
                _
            $region48: #{tpu_custom_call.1} parent=43 // pred_fallthru
              _
            // Predicated region
            $region49: #{tpu_custom_call.1} parent=43 // pred_check
              _
            $region50: #{tpu_custom_call.1} parent=43 // pred_check_branch
              %314 = sbr.rel (0) target = $region52
            $region51: #{tpu_custom_call.1} parent=43 // pred_region
              %s316 = ssub.s32 16, 1
              loop: start=0, step=1, limit=1
              $region53: #{tpu_custom_call.1} parent=51 // loop_pre_header
                _
              $region54: #{tpu_custom_call.1} parent=51 // loop_header
                %s318 = sphi 0, %s322
                %p319 = scmp.ge.s32.totalorder %s318, 1
                %s323 = sphi %s308, %s308
                %s324 = sphi %s302, %s302
              $region55: #{tpu_custom_call.1} parent=51 // loop_header_branch
                %321 = sbr.rel (%p319) target = $region59
              $region56: #{tpu_custom_call.1} parent=51 // loop_body
                %v325 = vld [vmem:[%s323] sm:%s316]
                %326 = vst [vmem:[%s324] sm:%s316] %v325
                %v327 = vld [vmem:[%s323 + $0x4] sm:%s316]
                %328 = vst [vmem:[%s324 + $0x4] sm:%s316] %v327
                %v329 = vld [vmem:[%s323 + $0x8] sm:%s316]
                %330 = vst [vmem:[%s324 + $0x8] sm:%s316] %v329
                %v331 = vld [vmem:[%s323 + $0xc] sm:%s316]
                %332 = vst [vmem:[%s324 + $0xc] sm:%s316] %v331
                %v333 = vld [vmem:[%s323 + $0x10] sm:%s316]
                %334 = vst [vmem:[%s324 + $0x10] sm:%s316] %v333
                %v335 = vld [vmem:[%s323 + $0x14] sm:%s316]
                %336 = vst [vmem:[%s324 + $0x14] sm:%s316] %v335
                %v337 = vld [vmem:[%s323 + $0x18] sm:%s316]
                %338 = vst [vmem:[%s324 + $0x18] sm:%s316] %v337
                %v339 = vld [vmem:[%s323 + $0x1c] sm:%s316]
                %340 = vst [vmem:[%s324 + $0x1c] sm:%s316] %v339
                %v341 = vld [vmem:[%s323 + $0x20] sm:%s316]
                %342 = vst [vmem:[%s324 + $0x20] sm:%s316] %v341
                %v343 = vld [vmem:[%s323 + $0x24] sm:%s316]
                %344 = vst [vmem:[%s324 + $0x24] sm:%s316] %v343
                %v345 = vld [vmem:[%s323 + $0x28] sm:%s316]
                %346 = vst [vmem:[%s324 + $0x28] sm:%s316] %v345
                %v347 = vld [vmem:[%s323 + $0x2c] sm:%s316]
                %348 = vst [vmem:[%s324 + $0x2c] sm:%s316] %v347
                %v349 = vld [vmem:[%s323 + $0x30] sm:%s316]
                %350 = vst [vmem:[%s324 + $0x30] sm:%s316] %v349
                %v351 = vld [vmem:[%s323 + $0x34] sm:%s316]
                %352 = vst [vmem:[%s324 + $0x34] sm:%s316] %v351
                %v353 = vld [vmem:[%s323 + $0x38] sm:%s316]
                %354 = vst [vmem:[%s324 + $0x38] sm:%s316] %v353
                %v355 = vld [vmem:[%s323 + $0x3c] sm:%s316]
                %356 = vst [vmem:[%s324 + $0x3c] sm:%s316] %v355
                %v357 = vld [vmem:[%s323 + $0x80] sm:%s316]
                %358 = vst [vmem:[%s324 + $0x40] sm:%s316] %v357
                %v359 = vld [vmem:[%s323 + $0x84] sm:%s316]
                %360 = vst [vmem:[%s324 + $0x44] sm:%s316] %v359
                %v361 = vld [vmem:[%s323 + $0x88] sm:%s316]
                %362 = vst [vmem:[%s324 + $0x48] sm:%s316] %v361
                %v363 = vld [vmem:[%s323 + $0x8c] sm:%s316]
                %364 = vst [vmem:[%s324 + $0x4c] sm:%s316] %v363
                %v365 = vld [vmem:[%s323 + $0x90] sm:%s316]
                %366 = vst [vmem:[%s324 + $0x50] sm:%s316] %v365
                %v367 = vld [vmem:[%s323 + $0x94] sm:%s316]
                %368 = vst [vmem:[%s324 + $0x54] sm:%s316] %v367
                %v369 = vld [vmem:[%s323 + $0x98] sm:%s316]
                %370 = vst [vmem:[%s324 + $0x58] sm:%s316] %v369
                %v371 = vld [vmem:[%s323 + $0x9c] sm:%s316]
                %372 = vst [vmem:[%s324 + $0x5c] sm:%s316] %v371
                %v373 = vld [vmem:[%s323 + $0xa0] sm:%s316]
                %374 = vst [vmem:[%s324 + $0x60] sm:%s316] %v373
                %v375 = vld [vmem:[%s323 + $0xa4] sm:%s316]
                %376 = vst [vmem:[%s324 + $0x64] sm:%s316] %v375
                %v377 = vld [vmem:[%s323 + $0xa8] sm:%s316]
                %378 = vst [vmem:[%s324 + $0x68] sm:%s316] %v377
                %v379 = vld [vmem:[%s323 + $0xac] sm:%s316]
                %380 = vst [vmem:[%s324 + $0x6c] sm:%s316] %v379
                %v381 = vld [vmem:[%s323 + $0xb0] sm:%s316]
                %382 = vst [vmem:[%s324 + $0x70] sm:%s316] %v381
                %v383 = vld [vmem:[%s323 + $0xb4] sm:%s316]
                %384 = vst [vmem:[%s324 + $0x74] sm:%s316] %v383
                %v385 = vld [vmem:[%s323 + $0xb8] sm:%s316]
                %386 = vst [vmem:[%s324 + $0x78] sm:%s316] %v385
                %v387 = vld [vmem:[%s323 + $0xbc] sm:%s316]
                %388 = vst [vmem:[%s324 + $0x7c] sm:%s316] %v387
              $region57: #{tpu_custom_call.1} parent=51 // loop_footer
                %s322 = sadd.s32 1, %s318
              $region58: #{tpu_custom_call.1} parent=51 // loop_footer_branch
                %317 = sbr.rel target = $region54
              $region59: #{tpu_custom_call.1} parent=51 // loop_exit
                _
            $region52: #{tpu_custom_call.1} parent=43 // pred_fallthru
              _
          $region44: #{tpu_custom_call.1} parent=39 // pred_fallthru
            _
          %473 = vnop
        $region40: #{tpu_custom_call.1} parent=35 // pred_fallthru
          _
      $region36: #{tpu_custom_call.1} parent=5 // pred_fallthru
        _
      %p474 = scmp.le.s32.totalorder 1, %s19
      %p475 = scmp.lt.s32.totalorder %s19, 3
      %p476 = pnand %p474, %p475
      %p477 = pneg %p476
      // Predicated region
      $region78: #{tpu_custom_call.1} parent=5 // pred_check
        _
      $region79: #{tpu_custom_call.1} parent=5 // pred_check_branch
        %479 = sbr.rel (%p476) target = $region81
      $region80: #{tpu_custom_call.1} parent=5 // pred_region
        %s480 = ssub.s32 %s19, 1
        %s481 = sand.u32 %s46, 1
        %s482 = sand.u32 %s46, 1
        %s483 = smul.addr %s482, 128
        %s484 = scalar_lea.vmem [#allocation3], %s483
        // Predicated region
        $region82: #{tpu_custom_call.1} parent=80 // pred_check
          %p485 = pneg %p59
        $region83: #{tpu_custom_call.1} parent=80 // pred_check_branch
          %487 = sbr.rel (%p485) target = $region85
        $region84: #{tpu_custom_call.1} parent=80 // pred_region
          _
        $region85: #{tpu_custom_call.1} parent=80 // pred_fallthru
          _
        // Predicated region
        $region86: #{tpu_custom_call.1} parent=80 // pred_check
          %p488 = pneg %p122
        $region87: #{tpu_custom_call.1} parent=80 // pred_check_branch
          %490 = sbr.rel (%p488) target = $region89
        $region88: #{tpu_custom_call.1} parent=80 // pred_region
          %491 = dma.done [#allocation5], 9216
        $region89: #{tpu_custom_call.1} parent=80 // pred_fallthru
          _
        // Predicated region
        $region90: #{tpu_custom_call.1} parent=80 // pred_check
          %p492 = pneg %p164
        $region91: #{tpu_custom_call.1} parent=80 // pred_check_branch
          %494 = sbr.rel (%p492) target = $region93
        $region92: #{tpu_custom_call.1} parent=80 // pred_region
          %495 = dma.done [#allocation8], 6144
        $region93: #{tpu_custom_call.1} parent=80 // pred_fallthru
          _
        %s496 = sand.u32 %s46, 1
        %s497 = sand.u32 %s46, 1
        %s498 = smul.addr %s497, 128
        %s499 = scalar_lea.vmem [#allocation3], %s498
        %p500 = pneg %p59
        %p501 = pneg %p56
        %p502 = pneg %p80
        %p503 = pneg %p77
        %p504 = pneg %p101
        %p505 = pneg %p98
        %p506 = pneg %p122
        %p507 = pneg %p119
        %p508 = pneg %p143
        %p509 = pneg %p140
        %p510 = pneg %p164
        %p511 = pneg %p161
        %p512 = pneg %p190
        %p513 = pneg %p187
        %p514 = pneg %p216
        %p515 = pneg %p213
        %p516 = pneg %p242
        %p517 = pneg %p239
        %s518 = smul.u32 2, %s28
        %s519 = smul.u32 16, %s29
        %p521 = scmp.eq.s32.totalorder %s29, 0
        // Predicated region
        $region94: #{tpu_custom_call.1} parent=80 // pred_check
          %p522 = pneg %p521
        $region95: #{tpu_custom_call.1} parent=80 // pred_check_branch
          %524 = sbr.rel (%p522) target = $region97
        $region96: #{tpu_custom_call.1} parent=80 // pred_region
          %vm525 = vcmask 25600
          %526 = vst.msk [vmem:[#allocation2] sm:$0x3] %vm525, 0.0
        $region97: #{tpu_custom_call.1} parent=80 // pred_fallthru
          _
        %v527 = vld [vmem:[%s484] sm:$0xf]
        %v528 = vld [vmem:[%s484 + $0x4] sm:$0xf]
        %v529 = vld [vmem:[%s484 + $0x8] sm:$0xf]
        %v530 = vld [vmem:[%s484 + $0xc] sm:$0xf]
        %v531 = vld [vmem:[%s484 + $0x10] sm:$0xf]
        %v532 = vld [vmem:[%s484 + $0x14] sm:$0xf]
        %v533 = vld [vmem:[%s484 + $0x18] sm:$0xf]
        %v534 = vld [vmem:[%s484 + $0x1c] sm:$0xf]
        %v535 = vld [vmem:[%s484 + $0x20] sm:$0xf]
        %v536 = vld [vmem:[%s484 + $0x24] sm:$0xf]
        %v537 = vld [vmem:[%s484 + $0x28] sm:$0xf]
        %v538 = vld [vmem:[%s484 + $0x2c] sm:$0xf]
        %v539 = vld [vmem:[%s484 + $0x30] sm:$0xf]
        %v540 = vld [vmem:[%s484 + $0x34] sm:$0xf]
        %v541 = vld [vmem:[%s484 + $0x38] sm:$0xf]
        %v542 = vld [vmem:[%s484 + $0x3c] sm:$0xf]
        %v543 = vld [vmem:[%s484 + $0x40] sm:$0xf]
        %v544 = vld [vmem:[%s484 + $0x44] sm:$0xf]
        %v545 = vld [vmem:[%s484 + $0x48] sm:$0xf]
        %v546 = vld [vmem:[%s484 + $0x4c] sm:$0xf]
        %v547 = vld [vmem:[%s484 + $0x50] sm:$0xf]
        %v548 = vld [vmem:[%s484 + $0x54] sm:$0xf]
        %v549 = vld [vmem:[%s484 + $0x58] sm:$0xf]
        %v550 = vld [vmem:[%s484 + $0x5c] sm:$0xf]
        %v551 = vld [vmem:[%s484 + $0x60] sm:$0xf]
        %v552 = vld [vmem:[%s484 + $0x64] sm:$0xf]
        %v553 = vld [vmem:[%s484 + $0x68] sm:$0xf]
        %v554 = vld [vmem:[%s484 + $0x6c] sm:$0xf]
        %v555 = vld [vmem:[%s484 + $0x70] sm:$0xf]
        %v556 = vld [vmem:[%s484 + $0x74] sm:$0xf]
        %v557 = vld [vmem:[%s484 + $0x78] sm:$0xf]
        %v558 = vld [vmem:[%s484 + $0x7c] sm:$0xf]
        %v559 = vunpack.c.l.bf16 %v527
        %v560 = vunpack.c.l.bf16 %v528
        %v561 = vunpack.c.l.bf16 %v529
        %v562 = vunpack.c.l.bf16 %v530
        %v563 = vunpack.c.l.bf16 %v531
        %v564 = vunpack.c.l.bf16 %v532
        %v565 = vunpack.c.l.bf16 %v533
        %v566 = vunpack.c.l.bf16 %v534
        %v567 = vunpack.c.l.bf16 %v535
        %v568 = vunpack.c.l.bf16 %v536
        %v569 = vunpack.c.l.bf16 %v537
        %v570 = vunpack.c.l.bf16 %v538
        %v571 = vunpack.c.l.bf16 %v539
        %v572 = vunpack.c.l.bf16 %v540
        %v573 = vunpack.c.l.bf16 %v541
        %v574 = vunpack.c.l.bf16 %v542
        %v575 = vunpack.c.l.bf16 %v543
        %v576 = vunpack.c.l.bf16 %v544
        %v577 = vunpack.c.l.bf16 %v545
        %v578 = vunpack.c.l.bf16 %v546
        %v579 = vunpack.c.l.bf16 %v547
        %v580 = vunpack.c.l.bf16 %v548
        %v581 = vunpack.c.l.bf16 %v549
        %v582 = vunpack.c.l.bf16 %v550
        %v583 = vunpack.c.l.bf16 %v551
        %v584 = vunpack.c.l.bf16 %v552
        %v585 = vunpack.c.l.bf16 %v553
        %v586 = vunpack.c.l.bf16 %v554
        %v587 = vunpack.c.l.bf16 %v555
        %v588 = vunpack.c.l.bf16 %v556
        %v589 = vunpack.c.l.bf16 %v557
        %v590 = vunpack.c.l.bf16 %v558
        %v591 = vld [vmem:[#allocation2] sm:$0x3]
        %vm592 = vcmask 31744
        %v593 = vsel %vm592, %v559, 0.0
        %v594 = vsel %vm592, %v560, 0.0
        %v595 = vadd.f32 %v593, %v594
        %v596 = vsel %vm592, %v561, 0.0
        %v597 = vadd.f32 %v595, %v596
        %v598 = vsel %vm592, %v562, 0.0
        %v599 = vadd.f32 %v597, %v598
        %v600 = vsel %vm592, %v563, 0.0
        %v601 = vadd.f32 %v599, %v600
        %v602 = vsel %vm592, %v564, 0.0
        %v603 = vadd.f32 %v601, %v602
        %v604 = vsel %vm592, %v565, 0.0
        %v605 = vadd.f32 %v603, %v604
        %v606 = vsel %vm592, %v566, 0.0
        %v607 = vadd.f32 %v605, %v606
        %v608 = vsel %vm592, %v567, 0.0
        %v609 = vadd.f32 %v607, %v608
        %v610 = vsel %vm592, %v568, 0.0
        %v611 = vadd.f32 %v609, %v610
        %v612 = vsel %vm592, %v569, 0.0
        %v613 = vadd.f32 %v611, %v612
        %v614 = vsel %vm592, %v570, 0.0
        %v615 = vadd.f32 %v613, %v614
        %v616 = vsel %vm592, %v571, 0.0
        %v617 = vadd.f32 %v615, %v616
        %v618 = vsel %vm592, %v572, 0.0
        %v619 = vadd.f32 %v617, %v618
        %v620 = vsel %vm592, %v573, 0.0
        %v621 = vadd.f32 %v619, %v620
        %v622 = vsel %vm592, %v574, 0.0
        %v623 = vadd.f32 %v621, %v622
        %v624 = vrot.slane %v623, 4
        %v625 = vadd.f32 %v623, %v624
        %v626 = vrot.slane %v625, 2
        %v627 = vadd.f32 %v625, %v626
        %v628 = vrot.slane %v627, 1
        %v629 = vadd.f32 %v627, %v628
        %v630 = vsel %vm592, %v575, 0.0
        %v631 = vsel %vm592, %v576, 0.0
        %v632 = vadd.f32 %v630, %v631
        %v633 = vsel %vm592, %v577, 0.0
        %v634 = vadd.f32 %v632, %v633
        %v635 = vsel %vm592, %v578, 0.0
        %v636 = vadd.f32 %v634, %v635
        %v637 = vsel %vm592, %v579, 0.0
        %v638 = vadd.f32 %v636, %v637
        %v639 = vsel %vm592, %v580, 0.0
        %v640 = vadd.f32 %v638, %v639
        %v641 = vsel %vm592, %v581, 0.0
        %v642 = vadd.f32 %v640, %v641
        %v643 = vsel %vm592, %v582, 0.0
        %v644 = vadd.f32 %v642, %v643
        %v645 = vsel %vm592, %v583, 0.0
        %v646 = vadd.f32 %v644, %v645
        %v647 = vsel %vm592, %v584, 0.0
        %v648 = vadd.f32 %v646, %v647
        %v649 = vsel %vm592, %v585, 0.0
        %v650 = vadd.f32 %v648, %v649
        %v651 = vsel %vm592, %v586, 0.0
        %v652 = vadd.f32 %v650, %v651
        %v653 = vsel %vm592, %v587, 0.0
        %v654 = vadd.f32 %v652, %v653
        %v655 = vsel %vm592, %v588, 0.0
        %v656 = vadd.f32 %v654, %v655
        %v657 = vsel %vm592, %v589, 0.0
        %v658 = vadd.f32 %v656, %v657
        %v659 = vsel %vm592, %v590, 0.0
        %v660 = vadd.f32 %v658, %v659
        %v661 = vrot.slane %v660, 4
        %v662 = vadd.f32 %v660, %v661
        %v663 = vrot.slane %v662, 2
        %v664 = vadd.f32 %v662, %v663
        %v665 = vrot.slane %v664, 1
        %v666 = vadd.f32 %v664, %v665
        %vm669 = vcmask 1041409
        %v670 = vsel %vm669, %v666, %v629
        %v672 = vadd.f32 %v591, %v670
        %vm673 = vcmask 25600
        %674 = vst.msk [vmem:[#allocation2] sm:$0x3] %vm673, %v672
        %p675 = scmp.eq.s32.totalorder %s29, 1
        // Predicated region
        $region98: #{tpu_custom_call.1} parent=80 // pred_check
          %p676 = pneg %p675
        $region99: #{tpu_custom_call.1} parent=80 // pred_check_branch
          %678 = sbr.rel (%p676) target = $region101
        $region100: #{tpu_custom_call.1} parent=80 // pred_region
          %v679 = vld [vmem:[%s1] sm:$0x3]
          %v680 = vld [vmem:[#allocation2] sm:$0x3]
          %v681 = vmul.f32 %v680, 0.00390625
          %v682 = vlaneseq
          %v683 = vshrl.u32 %v682, 7
          %v684 = vsub.s32 0, %v683
          %v685 = vrot.slane %v679, %v684
          %v686 = vmul.f32 %v681, %v685
          %v687 = vlaneseq
          %v688 = vshrl.u32 %v687, 7
          %v689 = vsub.s32 1, %v688
          %v690 = vrot.slane %v679, %v689
          %v691 = vadd.f32 %v686, %v690
          %692 = vst.msk [vmem:[#allocation9] sm:$0x3] %vm673, %v691
          %v693 = vpack.c.bf16 %v691, %v691
          %v694 = vld [vmem:[%s2] sm:$0x3f]
          %v696 = vcombine.high %v694, %v694
          %v698 = vunpack.c.l.s4 1983009808
          %v699 = vunpack.c.0.s8 %v698
          %v700 = vlaneseq
          %v701 = vshrl.u32 %v700, 7
          %v702 = vsub.s32 %v699, %v701
          %v703 = vrot.slane %v694, %v702
          %v705 = vunpack.c.l.s4 1983009808
          %v706 = vunpack.c.0.s8 %v705
          %v707 = vlaneseq
          %v708 = vshrl.u32 %v707, 7
          %v709 = vsub.s32 %v706, %v708
          %v710 = vrot.slane %v696, %v709
          %v711 = vcombine.high %v703, %v703
          %v713 = vsel %vm592, %v693, 0
          %vm715 = vcmask 1041408
          %v717 = vsel %vm715, %v703, 0
          %v720 = vsel %vm715, %v711, 0
          %v723 = vsel %vm715, %v710, 0
          %725 = vmatprep.subr.bf16.mxu0 0
          %726 = vmatpush1.bf16.msra.mxu0 0
          %727 = vmatprep.subr.bf16.mxu0 0
          %728 = vmatpush1.bf16.msra.mxu0 0
          %729 = vmatprep.subr.bf16.mxu0 0
          %730 = vmatpush1.bf16.msra.mxu0 0
          %731 = vmatprep.subr.bf16.mxu0 0
          %732 = vmatpush1.bf16.msra.mxu0 0
          %733 = vmatprep.subr.bf16.mxu0 0
          %734 = vmatpush1.bf16.msra.mxu0 0
          %735 = vmatprep.subr.bf16.mxu0 0
          %736 = vmatpush1.bf16.msra.mxu0 0
          %737 = vmatprep.subr.bf16.mxu0 0
          %738 = vmatpush1.bf16.msra.mxu0 0
          %739 = vmatprep.subr.bf16.mxu0 %v720
          %740 = vmatpush1.bf16.msra.mxu0 %v717
          %741 = vmatprep.subr.bf16.mxu0 0
          %742 = vmatpush2.bf16.msra.mxu0 0
          %743 = vmatprep.subr.bf16.mxu0 0
          %744 = vmatpush2.bf16.msra.mxu0 0
          %745 = vmatprep.subr.bf16.mxu0 0
          %746 = vmatpush2.bf16.msra.mxu0 0
          %747 = vmatprep.subr.bf16.mxu0 0
          %748 = vmatpush2.bf16.msra.mxu0 0
          %749 = vmatprep.subr.bf16.mxu0 0
          %750 = vmatpush2.bf16.msra.mxu0 0
          %751 = vmatprep.subr.bf16.mxu0 0
          %752 = vmatpush2.bf16.msra.mxu0 0
          %753 = vmatprep.subr.bf16.mxu0 0
          %754 = vmatpush2.bf16.msra.mxu0 0
          %755 = vmatprep.subr.bf16.mxu0 0
          %756 = vmatpush2.bf16.msra.mxu0 0
          %757 = vmatprep.mubr.bf16.mxu0 0
          %758 = vmatmul.mubr.bf16.gmra.mxu0 %v713
          %v759 = vpop.f32.mrf.mxu0
          %v760 = vadd.f32 0.0, %v759
          %v761 = vpop.f32.mrf.mxu0
          %v762 = vadd.f32 0.0, %v761
          %v763 = vpop.f32.mrf.mxu0
          %v764 = vpop.f32.mrf.mxu0
          %765 = vdwg.mxu0
          %766 = vmatprep.subr.bf16.mxu0 0
          %767 = vmatpush1.bf16.msra.mxu0 0
          %768 = vmatprep.subr.bf16.mxu0 0
          %769 = vmatpush1.bf16.msra.mxu0 0
          %770 = vmatprep.subr.bf16.mxu0 0
          %771 = vmatpush1.bf16.msra.mxu0 0
          %772 = vmatprep.subr.bf16.mxu0 0
          %773 = vmatpush1.bf16.msra.mxu0 0
          %774 = vmatprep.subr.bf16.mxu0 0
          %775 = vmatpush1.bf16.msra.mxu0 0
          %776 = vmatprep.subr.bf16.mxu0 0
          %777 = vmatpush1.bf16.msra.mxu0 0
          %778 = vmatprep.subr.bf16.mxu0 0
          %779 = vmatpush1.bf16.msra.mxu0 0
          %780 = vmatprep.subr.bf16.mxu0 0
          %781 = vmatpush1.bf16.msra.mxu0 %v723
          %782 = vmatprep.subr.bf16.mxu0 0
          %783 = vmatpush2.bf16.msra.mxu0 0
          %784 = vmatprep.subr.bf16.mxu0 0
          %785 = vmatpush2.bf16.msra.mxu0 0
          %786 = vmatprep.subr.bf16.mxu0 0
          %787 = vmatpush2.bf16.msra.mxu0 0
          %788 = vmatprep.subr.bf16.mxu0 0
          %789 = vmatpush2.bf16.msra.mxu0 0
          %790 = vmatprep.subr.bf16.mxu0 0
          %791 = vmatpush2.bf16.msra.mxu0 0
          %792 = vmatprep.subr.bf16.mxu0 0
          %793 = vmatpush2.bf16.msra.mxu0 0
          %794 = vmatprep.subr.bf16.mxu0 0
          %795 = vmatpush2.bf16.msra.mxu0 0
          %796 = vmatprep.subr.bf16.mxu0 0
          %797 = vmatpush2.bf16.msra.mxu0 0
          %798 = vmatprep.mubr.bf16.mxu0 0
          %799 = vmatmul.mubr.bf16.gmra.mxu0 %v713
          %v800 = vpop.f32.mrf.mxu0
          %v801 = vadd.f32 0.0, %v800
          %v802 = vpop.f32.mrf.mxu0
          %v803 = vpop.f32.mrf.mxu0
          %v804 = vpop.f32.mrf.mxu0
          %805 = vdwg.mxu0
          %v806 = vmax.f32 %v760, 0.0
          %v807 = vmax.f32 %v762, 0.0
          %v808 = vmax.f32 %v801, 0.0
          %v809 = vpack.c.bf16 %v806, %v806
          %v810 = vpack.c.bf16 %v807, %v807
          %v811 = vpack.c.bf16 %v808, %v808
          %v812 = vld [vmem:[#allocation4] sm:$0xff]
          %v813 = vld [vmem:[#allocation4 + $0x8] sm:$0xf]
          %v814 = vld [vmem:[#allocation4 + $0xc] sm:$0xff]
          %v815 = vld [vmem:[#allocation4 + $0x14] sm:$0xf]
          %v816 = vld [vmem:[#allocation4 + $0x18] sm:$0xff]
          %v817 = vld [vmem:[#allocation4 + $0x20] sm:$0xf]
          %v818 = vld [vmem:[#allocation4 + $0x24] sm:$0xff]
          %v819 = vld [vmem:[#allocation4 + $0x2c] sm:$0xf]
          %v820 = vld [vmem:[#allocation4 + $0x30] sm:$0xff]
          %v821 = vld [vmem:[#allocation4 + $0x38] sm:$0xf]
          %v822 = vld [vmem:[#allocation4 + $0x3c] sm:$0xff]
          %v823 = vld [vmem:[#allocation4 + $0x44] sm:$0xf]
          %v824 = vld [vmem:[#allocation4 + $0x48] sm:$0xff]
          %v825 = vld [vmem:[#allocation4 + $0x50] sm:$0xf]
          %v826 = vld [vmem:[#allocation4 + $0x54] sm:$0xff]
          %v827 = vld [vmem:[#allocation4 + $0x5c] sm:$0xf]
          %v828 = vld [vmem:[#allocation4 + $0x60] sm:$0xff]
          %v829 = vld [vmem:[#allocation4 + $0x68] sm:$0xf]
          %v830 = vld [vmem:[#allocation4 + $0x6c] sm:$0xff]
          %v831 = vld [vmem:[#allocation4 + $0x74] sm:$0xf]
          %v832 = vld [vmem:[#allocation4 + $0x78] sm:$0xff]
          %v833 = vld [vmem:[#allocation4 + $0x80] sm:$0xf]
          %v834 = vld [vmem:[#allocation4 + $0x84] sm:$0xff]
          %v835 = vld [vmem:[#allocation4 + $0x8c] sm:$0xf]
          %v836 = vld [vmem:[#allocation4 + $0x90] sm:$0xff]
          %v837 = vld [vmem:[#allocation4 + $0x98] sm:$0xf]
          %v838 = vld [vmem:[#allocation4 + $0x9c] sm:$0xff]
          %v839 = vld [vmem:[#allocation4 + $0xa4] sm:$0xf]
          %v840 = vld [vmem:[#allocation4 + $0xa8] sm:$0xff]
          %v841 = vld [vmem:[#allocation4 + $0xb0] sm:$0xf]
          %v842 = vld [vmem:[#allocation4 + $0xb4] sm:$0xff]
          %v843 = vld [vmem:[#allocation4 + $0xbc] sm:$0xf]
          %v844 = vld [vmem:[#allocation4 + $0xc0] sm:$0xff]
          %v845 = vld [vmem:[#allocation4 + $0xc8] sm:$0xf]
          %v846 = vld [vmem:[#allocation4 + $0xcc] sm:$0xff]
          %v847 = vld [vmem:[#allocation4 + $0xd4] sm:$0xf]
          %v848 = vld [vmem:[#allocation4 + $0xd8] sm:$0xff]
          %v849 = vld [vmem:[#allocation4 + $0xe0] sm:$0xf]
          %v850 = vld [vmem:[#allocation4 + $0xe4] sm:$0xff]
          %v851 = vld [vmem:[#allocation4 + $0xec] sm:$0xf]
          %v852 = vld [vmem:[#allocation4 + $0xf0] sm:$0xff]
          %v853 = vld [vmem:[#allocation4 + $0xf8] sm:$0xf]
          %v854 = vld [vmem:[#allocation4 + $0xfc] sm:$0xff]
          %v855 = vld [vmem:[#allocation4 + $0x104] sm:$0xf]
          %v856 = vld [vmem:[#allocation4 + $0x108] sm:$0xff]
          %v857 = vld [vmem:[#allocation4 + $0x110] sm:$0xf]
          %v858 = vld [vmem:[#allocation4 + $0x114] sm:$0xff]
          %v859 = vld [vmem:[#allocation4 + $0x11c] sm:$0xf]
          %v860 = vld [vmem:[#allocation4 + $0x120] sm:$0xff]
          %v861 = vld [vmem:[#allocation4 + $0x128] sm:$0xf]
          %v862 = vld [vmem:[#allocation4 + $0x12c] sm:$0xff]
          %v863 = vld [vmem:[#allocation4 + $0x134] sm:$0xf]
          %v864 = vld [vmem:[#allocation4 + $0x138] sm:$0xff]
          %v865 = vld [vmem:[#allocation4 + $0x140] sm:$0xf]
          %v866 = vld [vmem:[#allocation4 + $0x144] sm:$0xff]
          %v867 = vld [vmem:[#allocation4 + $0x14c] sm:$0xf]
          %v868 = vld [vmem:[#allocation4 + $0x150] sm:$0xff]
          %v869 = vld [vmem:[#allocation4 + $0x158] sm:$0xf]
          %v870 = vld [vmem:[#allocation4 + $0x15c] sm:$0xff]
          %v871 = vld [vmem:[#allocation4 + $0x164] sm:$0xf]
          %v872 = vld [vmem:[#allocation4 + $0x168] sm:$0xff]
          %v873 = vld [vmem:[#allocation4 + $0x170] sm:$0xf]
          %v874 = vld [vmem:[#allocation4 + $0x174] sm:$0xff]
          %v875 = vld [vmem:[#allocation4 + $0x17c] sm:$0xf]
          %v876 = vld [vmem:[#allocation4 + $0x180] sm:$0xff]
          %v877 = vld [vmem:[#allocation4 + $0x188] sm:$0xf]
          %v878 = vld [vmem:[#allocation4 + $0x18c] sm:$0xff]
          %v879 = vld [vmem:[#allocation4 + $0x194] sm:$0xf]
          %v880 = vld [vmem:[#allocation4 + $0x198] sm:$0xff]
          %v881 = vld [vmem:[#allocation4 + $0x1a0] sm:$0xf]
          %v882 = vld [vmem:[#allocation4 + $0x1a4] sm:$0xff]
          %v883 = vld [vmem:[#allocation4 + $0x1ac] sm:$0xf]
          %v884 = vld [vmem:[#allocation4 + $0x1b0] sm:$0xff]
          %v885 = vld [vmem:[#allocation4 + $0x1b8] sm:$0xf]
          %v886 = vld [vmem:[#allocation4 + $0x1bc] sm:$0xff]
          %v887 = vld [vmem:[#allocation4 + $0x1c4] sm:$0xf]
          %v888 = vld [vmem:[#allocation4 + $0x1c8] sm:$0xff]
          %v889 = vld [vmem:[#allocation4 + $0x1d0] sm:$0xf]
          %v890 = vld [vmem:[#allocation4 + $0x1d4] sm:$0xff]
          %v891 = vld [vmem:[#allocation4 + $0x1dc] sm:$0xf]
          %v892 = vld [vmem:[#allocation4 + $0x1e0] sm:$0xff]
          %v893 = vld [vmem:[#allocation4 + $0x1e8] sm:$0xf]
          %v894 = vld [vmem:[#allocation4 + $0x1ec] sm:$0xff]
          %v895 = vld [vmem:[#allocation4 + $0x1f4] sm:$0xf]
          %v896 = vld [vmem:[#allocation4 + $0x1f8] sm:$0xff]
          %v897 = vld [vmem:[#allocation4 + $0x200] sm:$0xf]
          %v898 = vld [vmem:[#allocation4 + $0x204] sm:$0xff]
          %v899 = vld [vmem:[#allocation4 + $0x20c] sm:$0xf]
          %v900 = vld [vmem:[#allocation4 + $0x210] sm:$0xff]
          %v901 = vld [vmem:[#allocation4 + $0x218] sm:$0xf]
          %v902 = vld [vmem:[#allocation4 + $0x21c] sm:$0xff]
          %v903 = vld [vmem:[#allocation4 + $0x224] sm:$0xf]
          %v904 = vld [vmem:[#allocation4 + $0x228] sm:$0xff]
          %v905 = vld [vmem:[#allocation4 + $0x230] sm:$0xf]
          %v906 = vld [vmem:[#allocation4 + $0x234] sm:$0xff]
          %v907 = vld [vmem:[#allocation4 + $0x23c] sm:$0xf]
          %v908 = vld [vmem:[%s4] sm:$0x7]
          %v910 = vlaneseq
          %v911 = vshrl.u32 %v910, 7
          %v912 = vsub.s32 0, %v911
          %v913 = vrot.slane %v908, %v912
          %v914 = vlaneseq
          %v915 = vshrl.u32 %v914, 7
          %v916 = vsub.s32 1, %v915
          %v917 = vrot.slane %v908, %v916
          %v918 = vlaneseq
          %v919 = vshrl.u32 %v918, 7
          %v920 = vsub.s32 2, %v919
          %v921 = vrot.slane %v908, %v920
          %v1021 = vunpack.c.l.b16 %v812
          %v1022 = vunpack.c.h.b16 %v812
          %v1023 = vunpack.c.l.b16 %v813
          %v1024 = vunpack.c.l.b16 %v814
          %v1025 = vunpack.c.h.b16 %v814
          %v1026 = vunpack.c.l.b16 %v815
          %v1027 = vunpack.c.l.b16 %v816
          %v1028 = vunpack.c.h.b16 %v816
          %v1029 = vunpack.c.l.b16 %v817
          %v1030 = vunpack.c.l.b16 %v818
          %v1031 = vunpack.c.h.b16 %v818
          %v1032 = vunpack.c.l.b16 %v819
          %v1033 = vunpack.c.l.b16 %v820
          %v1034 = vunpack.c.h.b16 %v820
          %v1035 = vunpack.c.l.b16 %v821
          %v1036 = vunpack.c.l.b16 %v822
          %v1037 = vunpack.c.h.b16 %v822
          %v1038 = vunpack.c.l.b16 %v823
          %v1039 = vunpack.c.l.b16 %v824
          %v1040 = vunpack.c.h.b16 %v824
          %v1041 = vunpack.c.l.b16 %v825
          %v1042 = vunpack.c.l.b16 %v826
          %v1043 = vunpack.c.h.b16 %v826
          %v1044 = vunpack.c.l.b16 %v827
          %v1045 = vunpack.c.l.b16 %v828
          %v1046 = vunpack.c.h.b16 %v828
          %v1047 = vunpack.c.l.b16 %v829
          %v1048 = vunpack.c.l.b16 %v830
          %v1049 = vunpack.c.h.b16 %v830
          %v1050 = vunpack.c.l.b16 %v831
          %v1051 = vunpack.c.l.b16 %v832
          %v1052 = vunpack.c.h.b16 %v832
          %v1053 = vunpack.c.l.b16 %v833
          %v1054 = vunpack.c.l.b16 %v834
          %v1055 = vunpack.c.h.b16 %v834
          %v1056 = vunpack.c.l.b16 %v835
          %v1057 = vunpack.c.l.b16 %v836
          %v1058 = vunpack.c.h.b16 %v836
          %v1059 = vunpack.c.l.b16 %v837
          %v1060 = vunpack.c.l.b16 %v838
          %v1061 = vunpack.c.h.b16 %v838
          %v1062 = vunpack.c.l.b16 %v839
          %v1063 = vunpack.c.l.b16 %v840
          %v1064 = vunpack.c.h.b16 %v840
          %v1065 = vunpack.c.l.b16 %v841
          %v1066 = vunpack.c.l.b16 %v842
          %v1067 = vunpack.c.h.b16 %v842
          %v1068 = vunpack.c.l.b16 %v843
          %v1069 = vunpack.c.l.b16 %v844
          %v1070 = vunpack.c.h.b16 %v844
          %v1071 = vunpack.c.l.b16 %v845
          %v1072 = vunpack.c.l.b16 %v846
          %v1073 = vunpack.c.h.b16 %v846
          %v1074 = vunpack.c.l.b16 %v847
          %v1075 = vunpack.c.l.b16 %v848
          %v1076 = vunpack.c.h.b16 %v848
          %v1077 = vunpack.c.l.b16 %v849
          %v1078 = vunpack.c.l.b16 %v850
          %v1079 = vunpack.c.h.b16 %v850
          %v1080 = vunpack.c.l.b16 %v851
          %v1081 = vunpack.c.l.b16 %v852
          %v1082 = vunpack.c.h.b16 %v852
          %v1083 = vunpack.c.l.b16 %v853
          %v1084 = vunpack.c.l.b16 %v854
          %v1085 = vunpack.c.h.b16 %v854
          %v1086 = vunpack.c.l.b16 %v855
          %v1087 = vunpack.c.l.b16 %v856
          %v1088 = vunpack.c.h.b16 %v856
          %v1089 = vunpack.c.l.b16 %v857
          %v1090 = vunpack.c.l.b16 %v858
          %v1091 = vunpack.c.h.b16 %v858
          %v1092 = vunpack.c.l.b16 %v859
          %v1093 = vunpack.c.l.b16 %v860
          %v1094 = vunpack.c.h.b16 %v860
          %v1095 = vunpack.c.l.b16 %v861
          %v1096 = vunpack.c.l.b16 %v862
          %v1097 = vunpack.c.h.b16 %v862
          %v1098 = vunpack.c.l.b16 %v863
          %v1099 = vunpack.c.l.b16 %v864
          %v1100 = vunpack.c.h.b16 %v864
          %v1101 = vunpack.c.l.b16 %v865
          %v1102 = vunpack.c.l.b16 %v866
          %v1103 = vunpack.c.h.b16 %v866
          %v1104 = vunpack.c.l.b16 %v867
          %v1105 = vunpack.c.l.b16 %v868
          %v1106 = vunpack.c.h.b16 %v868
          %v1107 = vunpack.c.l.b16 %v869
          %v1108 = vunpack.c.l.b16 %v870
          %v1109 = vunpack.c.h.b16 %v870
          %v1110 = vunpack.c.l.b16 %v871
          %v1111 = vunpack.c.l.b16 %v872
          %v1112 = vunpack.c.h.b16 %v872
          %v1113 = vunpack.c.l.b16 %v873
          %v1114 = vunpack.c.l.b16 %v874
          %v1115 = vunpack.c.h.b16 %v874
          %v1116 = vunpack.c.l.b16 %v875
          %v1117 = vunpack.c.l.b16 %v876
          %v1118 = vunpack.c.h.b16 %v876
          %v1119 = vunpack.c.l.b16 %v877
          %v1120 = vunpack.c.l.b16 %v878
          %v1121 = vunpack.c.h.b16 %v878
          %v1122 = vunpack.c.l.b16 %v879
          %v1123 = vunpack.c.l.b16 %v880
          %v1124 = vunpack.c.h.b16 %v880
          %v1125 = vunpack.c.l.b16 %v881
          %v1126 = vunpack.c.l.b16 %v882
          %v1127 = vunpack.c.h.b16 %v882
          %v1128 = vunpack.c.l.b16 %v883
          %v1129 = vunpack.c.l.b16 %v884
          %v1130 = vunpack.c.h.b16 %v884
          %v1131 = vunpack.c.l.b16 %v885
          %v1132 = vunpack.c.l.b16 %v886
          %v1133 = vunpack.c.h.b16 %v886
          %v1134 = vunpack.c.l.b16 %v887
          %v1135 = vunpack.c.l.b16 %v888
          %v1136 = vunpack.c.h.b16 %v888
          %v1137 = vunpack.c.l.b16 %v889
          %v1138 = vunpack.c.l.b16 %v890
          %v1139 = vunpack.c.h.b16 %v890
          %v1140 = vunpack.c.l.b16 %v891
          %v1141 = vunpack.c.l.b16 %v892
          %v1142 = vunpack.c.h.b16 %v892
          %v1143 = vunpack.c.l.b16 %v893
          %v1144 = vunpack.c.l.b16 %v894
          %v1145 = vunpack.c.h.b16 %v894
          %v1146 = vunpack.c.l.b16 %v895
          %v1147 = vunpack.c.l.b16 %v896
          %v1148 = vunpack.c.h.b16 %v896
          %v1149 = vunpack.c.l.b16 %v897
          %v1150 = vunpack.c.l.b16 %v898
          %v1151 = vunpack.c.h.b16 %v898
          %v1152 = vunpack.c.l.b16 %v899
          %v1153 = vunpack.c.l.b16 %v900
          %v1154 = vunpack.c.h.b16 %v900
          %v1155 = vunpack.c.l.b16 %v901
          %v1156 = vunpack.c.l.b16 %v902
          %v1157 = vunpack.c.h.b16 %v902
          %v1158 = vunpack.c.l.b16 %v903
          %v1159 = vunpack.c.l.b16 %v904
          %v1160 = vunpack.c.h.b16 %v904
          %v1161 = vunpack.c.l.b16 %v905
          %v1162 = vunpack.c.l.b16 %v906
          %v1163 = vunpack.c.h.b16 %v906
          %v1164 = vunpack.c.l.b16 %v907
          %v1165 = vpack.c.b16 %v1024, %v1021
          %v1166 = vpack.c.b16 %v1025, %v1022
          %v1167 = vpack.c.b16 %v1026, %v1023
          %v1168 = vpack.c.b16 %v1030, %v1027
          %v1169 = vpack.c.b16 %v1031, %v1028
          %v1170 = vpack.c.b16 %v1032, %v1029
          %v1171 = vpack.c.b16 %v1036, %v1033
          %v1172 = vpack.c.b16 %v1037, %v1034
          %v1173 = vpack.c.b16 %v1038, %v1035
          %v1174 = vpack.c.b16 %v1042, %v1039
          %v1175 = vpack.c.b16 %v1043, %v1040
          %v1176 = vpack.c.b16 %v1044, %v1041
          %v1177 = vpack.c.b16 %v1048, %v1045
          %v1178 = vpack.c.b16 %v1049, %v1046
          %v1179 = vpack.c.b16 %v1050, %v1047
          %v1180 = vpack.c.b16 %v1054, %v1051
          %v1181 = vpack.c.b16 %v1055, %v1052
          %v1182 = vpack.c.b16 %v1056, %v1053
          %v1183 = vpack.c.b16 %v1060, %v1057
          %v1184 = vpack.c.b16 %v1061, %v1058
          %v1185 = vpack.c.b16 %v1062, %v1059
          %v1186 = vpack.c.b16 %v1066, %v1063
          %v1187 = vpack.c.b16 %v1067, %v1064
          %v1188 = vpack.c.b16 %v1068, %v1065
          %v1189 = vpack.c.b16 %v1072, %v1069
          %v1190 = vpack.c.b16 %v1073, %v1070
          %v1191 = vpack.c.b16 %v1074, %v1071
          %v1192 = vpack.c.b16 %v1078, %v1075
          %v1193 = vpack.c.b16 %v1079, %v1076
          %v1194 = vpack.c.b16 %v1080, %v1077
          %v1195 = vpack.c.b16 %v1084, %v1081
          %v1196 = vpack.c.b16 %v1085, %v1082
          %v1197 = vpack.c.b16 %v1086, %v1083
          %v1198 = vpack.c.b16 %v1090, %v1087
          %v1199 = vpack.c.b16 %v1091, %v1088
          %v1200 = vpack.c.b16 %v1092, %v1089
          %v1201 = vpack.c.b16 %v1096, %v1093
          %v1202 = vpack.c.b16 %v1097, %v1094
          %v1203 = vpack.c.b16 %v1098, %v1095
          %v1204 = vpack.c.b16 %v1102, %v1099
          %v1205 = vpack.c.b16 %v1103, %v1100
          %v1206 = vpack.c.b16 %v1104, %v1101
          %v1207 = vpack.c.b16 %v1108, %v1105
          %v1208 = vpack.c.b16 %v1109, %v1106
          %v1209 = vpack.c.b16 %v1110, %v1107
          %v1210 = vpack.c.b16 %v1114, %v1111
          %v1211 = vpack.c.b16 %v1115, %v1112
          %v1212 = vpack.c.b16 %v1116, %v1113
          %v1213 = vpack.c.b16 %v1120, %v1117
          %v1214 = vpack.c.b16 %v1121, %v1118
          %v1215 = vpack.c.b16 %v1122, %v1119
          %v1216 = vpack.c.b16 %v1126, %v1123
          %v1217 = vpack.c.b16 %v1127, %v1124
          %v1218 = vpack.c.b16 %v1128, %v1125
          %v1219 = vpack.c.b16 %v1132, %v1129
          %v1220 = vpack.c.b16 %v1133, %v1130
          %v1221 = vpack.c.b16 %v1134, %v1131
          %v1222 = vpack.c.b16 %v1138, %v1135
          %v1223 = vpack.c.b16 %v1139, %v1136
          %v1224 = vpack.c.b16 %v1140, %v1137
          %v1225 = vpack.c.b16 %v1144, %v1141
          %v1226 = vpack.c.b16 %v1145, %v1142
          %v1227 = vpack.c.b16 %v1146, %v1143
          %v1228 = vpack.c.b16 %v1150, %v1147
          %v1229 = vpack.c.b16 %v1151, %v1148
          %v1230 = vpack.c.b16 %v1152, %v1149
          %v1231 = vpack.c.b16 %v1156, %v1153
          %v1232 = vpack.c.b16 %v1157, %v1154
          %v1233 = vpack.c.b16 %v1158, %v1155
          %v1234 = vpack.c.b16 %v1162, %v1159
          %v1235 = vpack.c.b16 %v1163, %v1160
          %v1236 = vpack.c.b16 %v1164, %v1161
          %1309 = vmatprep.subr.bf16.mxu0 %v1187
          %1310 = vmatpush1.bf16.msra.mxu0 %v1186
          %1311 = vmatprep.subr.bf16.mxu0 %v1184
          %1312 = vmatpush1.bf16.msra.mxu0 %v1183
          %1313 = vmatprep.subr.bf16.mxu0 %v1181
          %1314 = vmatpush1.bf16.msra.mxu0 %v1180
          %1315 = vmatprep.subr.bf16.mxu0 %v1178
          %1316 = vmatpush1.bf16.msra.mxu0 %v1177
          %1317 = vmatprep.subr.bf16.mxu0 %v1175
          %1318 = vmatpush1.bf16.msra.mxu0 %v1174
          %1319 = vmatprep.subr.bf16.mxu0 %v1172
          %1320 = vmatpush1.bf16.msra.mxu0 %v1171
          %1321 = vmatprep.subr.bf16.mxu0 %v1169
          %1322 = vmatpush1.bf16.msra.mxu0 %v1168
          %1323 = vmatprep.subr.bf16.mxu0 %v1166
          %1324 = vmatpush1.bf16.msra.mxu0 %v1165
          %1325 = vmatprep.subr.bf16.mxu0 %v1211
          %1326 = vmatpush2.bf16.msra.mxu0 %v1210
          %1327 = vmatprep.subr.bf16.mxu0 %v1208
          %1328 = vmatpush2.bf16.msra.mxu0 %v1207
          %1329 = vmatprep.subr.bf16.mxu0 %v1205
          %1330 = vmatpush2.bf16.msra.mxu0 %v1204
          %1331 = vmatprep.subr.bf16.mxu0 %v1202
          %1332 = vmatpush2.bf16.msra.mxu0 %v1201
          %1333 = vmatprep.subr.bf16.mxu0 %v1199
          %1334 = vmatpush2.bf16.msra.mxu0 %v1198
          %1335 = vmatprep.subr.bf16.mxu0 %v1196
          %1336 = vmatpush2.bf16.msra.mxu0 %v1195
          %1337 = vmatprep.subr.bf16.mxu0 %v1193
          %1338 = vmatpush2.bf16.msra.mxu0 %v1192
          %1339 = vmatprep.subr.bf16.mxu0 %v1190
          %1340 = vmatpush2.bf16.msra.mxu0 %v1189
          %1341 = vmatprep.mubr.bf16.mxu0 %v810
          %1342 = vmatmul.mubr.bf16.gmra.mxu0 %v809
          %v1343 = vpop.f32.mrf.mxu0
          %v1344 = vadd.f32 %v913, %v1343
          %v1345 = vpop.f32.mrf.mxu0
          %v1346 = vadd.f32 %v917, %v1345
          %v1347 = vpop.f32.mrf.mxu0
          %v1348 = vpop.f32.mrf.mxu0
          %1349 = vdwg.mxu0
          %1350 = vmatprep.subr.bf16.mxu0 %v1235
          %1351 = vmatpush1.bf16.msra.mxu0 %v1234
          %1352 = vmatprep.subr.bf16.mxu0 %v1232
          %1353 = vmatpush1.bf16.msra.mxu0 %v1231
          %1354 = vmatprep.subr.bf16.mxu0 %v1229
          %1355 = vmatpush1.bf16.msra.mxu0 %v1228
          %1356 = vmatprep.subr.bf16.mxu0 %v1226
          %1357 = vmatpush1.bf16.msra.mxu0 %v1225
          %1358 = vmatprep.subr.bf16.mxu0 %v1223
          %1359 = vmatpush1.bf16.msra.mxu0 %v1222
          %1360 = vmatprep.subr.bf16.mxu0 %v1220
          %1361 = vmatpush1.bf16.msra.mxu0 %v1219
          %1362 = vmatprep.subr.bf16.mxu0 %v1217
          %1363 = vmatpush1.bf16.msra.mxu0 %v1216
          %1364 = vmatprep.subr.bf16.mxu0 %v1214
          %1365 = vmatpush1.bf16.msra.mxu0 %v1213
          %1366 = vmatprep.subr.bf16.mxu0 0
          %1367 = vmatpush2.bf16.msra.mxu0 0
          %1368 = vmatprep.subr.bf16.mxu0 0
          %1369 = vmatpush2.bf16.msra.mxu0 0
          %1370 = vmatprep.subr.bf16.mxu0 0
          %1371 = vmatpush2.bf16.msra.mxu0 0
          %1372 = vmatprep.subr.bf16.mxu0 0
          %1373 = vmatpush2.bf16.msra.mxu0 0
          %1374 = vmatprep.subr.bf16.mxu0 0
          %1375 = vmatpush2.bf16.msra.mxu0 0
          %1376 = vmatprep.subr.bf16.mxu0 0
          %1377 = vmatpush2.bf16.msra.mxu0 0
          %1378 = vmatprep.subr.bf16.mxu0 0
          %1379 = vmatpush2.bf16.msra.mxu0 0
          %1380 = vmatprep.subr.bf16.mxu0 0
          %1381 = vmatpush2.bf16.msra.mxu0 0
          %1382 = vmatprep.mubr.bf16.mxu0 0
          %1383 = vmatmul.mubr.bf16.gmra.mxu0 %v811
          %v1384 = vpop.f32.mrf.mxu0
          %v1385 = vadd.f32 %v1344, %v1384
          %v1386 = vpop.f32.mrf.mxu0
          %v1387 = vadd.f32 %v1346, %v1386
          %v1388 = vpop.f32.mrf.mxu0
          %v1389 = vpop.f32.mrf.mxu0
          %1390 = vdwg.mxu0
          %1391 = vmatprep.subr.bf16.mxu0 0
          %1392 = vmatpush1.bf16.msra.mxu0 %v1188
          %1393 = vmatprep.subr.bf16.mxu0 0
          %1394 = vmatpush1.bf16.msra.mxu0 %v1185
          %1395 = vmatprep.subr.bf16.mxu0 0
          %1396 = vmatpush1.bf16.msra.mxu0 %v1182
          %1397 = vmatprep.subr.bf16.mxu0 0
          %1398 = vmatpush1.bf16.msra.mxu0 %v1179
          %1399 = vmatprep.subr.bf16.mxu0 0
          %1400 = vmatpush1.bf16.msra.mxu0 %v1176
          %1401 = vmatprep.subr.bf16.mxu0 0
          %1402 = vmatpush1.bf16.msra.mxu0 %v1173
          %1403 = vmatprep.subr.bf16.mxu0 0
          %1404 = vmatpush1.bf16.msra.mxu0 %v1170
          %1405 = vmatprep.subr.bf16.mxu0 0
          %1406 = vmatpush1.bf16.msra.mxu0 %v1167
          %1407 = vmatprep.subr.bf16.mxu0 0
          %1408 = vmatpush2.bf16.msra.mxu0 %v1212
          %1409 = vmatprep.subr.bf16.mxu0 0
          %1410 = vmatpush2.bf16.msra.mxu0 %v1209
          %1411 = vmatprep.subr.bf16.mxu0 0
          %1412 = vmatpush2.bf16.msra.mxu0 %v1206
          %1413 = vmatprep.subr.bf16.mxu0 0
          %1414 = vmatpush2.bf16.msra.mxu0 %v1203
          %1415 = vmatprep.subr.bf16.mxu0 0
          %1416 = vmatpush2.bf16.msra.mxu0 %v1200
          %1417 = vmatprep.subr.bf16.mxu0 0
          %1418 = vmatpush2.bf16.msra.mxu0 %v1197
          %1419 = vmatprep.subr.bf16.mxu0 0
          %1420 = vmatpush2.bf16.msra.mxu0 %v1194
          %1421 = vmatprep.subr.bf16.mxu0 0
          %1422 = vmatpush2.bf16.msra.mxu0 %v1191
          %1423 = vmatprep.mubr.bf16.mxu0 %v810
          %1424 = vmatmul.mubr.bf16.gmra.mxu0 %v809
          %v1425 = vpop.f32.mrf.mxu0
          %v1426 = vadd.f32 %v921, %v1425
          %v1427 = vpop.f32.mrf.mxu0
          %v1428 = vpop.f32.mrf.mxu0
          %v1429 = vpop.f32.mrf.mxu0
          %1430 = vdwg.mxu0
          %1431 = vmatprep.subr.bf16.mxu0 0
          %1432 = vmatpush1.bf16.msra.mxu0 %v1236
          %1433 = vmatprep.subr.bf16.mxu0 0
          %1434 = vmatpush1.bf16.msra.mxu0 %v1233
          %1435 = vmatprep.subr.bf16.mxu0 0
          %1436 = vmatpush1.bf16.msra.mxu0 %v1230
          %1437 = vmatprep.subr.bf16.mxu0 0
          %1438 = vmatpush1.bf16.msra.mxu0 %v1227
          %1439 = vmatprep.subr.bf16.mxu0 0
          %1440 = vmatpush1.bf16.msra.mxu0 %v1224
          %1441 = vmatprep.subr.bf16.mxu0 0
          %1442 = vmatpush1.bf16.msra.mxu0 %v1221
          %1443 = vmatprep.subr.bf16.mxu0 0
          %1444 = vmatpush1.bf16.msra.mxu0 %v1218
          %1445 = vmatprep.subr.bf16.mxu0 0
          %1446 = vmatpush1.bf16.msra.mxu0 %v1215
          %1447 = vmatprep.subr.bf16.mxu0 0
          %1448 = vmatpush2.bf16.msra.mxu0 0
          %1449 = vmatprep.subr.bf16.mxu0 0
          %1450 = vmatpush2.bf16.msra.mxu0 0
          %1451 = vmatprep.subr.bf16.mxu0 0
          %1452 = vmatpush2.bf16.msra.mxu0 0
          %1453 = vmatprep.subr.bf16.mxu0 0
          %1454 = vmatpush2.bf16.msra.mxu0 0
          %1455 = vmatprep.subr.bf16.mxu0 0
          %1456 = vmatpush2.bf16.msra.mxu0 0
          %1457 = vmatprep.subr.bf16.mxu0 0
          %1458 = vmatpush2.bf16.msra.mxu0 0
          %1459 = vmatprep.subr.bf16.mxu0 0
          %1460 = vmatpush2.bf16.msra.mxu0 0
          %1461 = vmatprep.subr.bf16.mxu0 0
          %1462 = vmatpush2.bf16.msra.mxu0 0
          %1463 = vmatprep.mubr.bf16.mxu0 0
          %1464 = vmatmul.mubr.bf16.gmra.mxu0 %v811
          %v1465 = vpop.f32.mrf.mxu0
          %v1466 = vadd.f32 %v1426, %v1465
          %v1467 = vpop.f32.mrf.mxu0
          %v1468 = vpop.f32.mrf.mxu0
          %v1469 = vpop.f32.mrf.mxu0
          %1470 = vdwg.mxu0
          %v1474 = vcombine.low %v1385, %v1387
          %v1476 = vunpack.c.l.s4 1983009808
          %v1477 = vunpack.c.0.s8 %v1476
          %v1478 = vlaneseq
          %v1479 = vshrl.u32 %v1478, 7
          %v1480 = vsub.s32 %v1477, %v1479
          %v1481 = vrot.slane %v1474, %v1480
          %v1483 = vunpack.c.l.s4 1983009808
          %v1484 = vunpack.c.0.s8 %v1483
          %v1485 = vlaneseq
          %v1486 = vshrl.u32 %v1485, 7
          %v1487 = vsub.s32 %v1484, %v1486
          %v1488 = vrot.slane %v1466, %v1487
          %v1489 = vcombine.low %v1481, %v1488
          %1491 = vst [vmem:[#allocation10] sm:$0x3f] %v1489
          %v1492 = vpack.c.bf16 %v1385, %v1385
          %v1493 = vpack.c.bf16 %v1387, %v1387
          %v1494 = vpack.c.bf16 %v1466, %v1466
          %v1495 = vld [vmem:[#allocation7] sm:$0xff]
          %v1496 = vld [vmem:[#allocation7 + $0x8] sm:$0xff]
          %v1497 = vld [vmem:[#allocation7 + $0x10] sm:$0xff]
          %v1498 = vld [vmem:[#allocation7 + $0x18] sm:$0xff]
          %v1499 = vld [vmem:[#allocation7 + $0x20] sm:$0xff]
          %v1500 = vld [vmem:[#allocation7 + $0x28] sm:$0xff]
          %v1501 = vld [vmem:[#allocation7 + $0x30] sm:$0xff]
          %v1502 = vld [vmem:[#allocation7 + $0x38] sm:$0xff]
          %v1503 = vld [vmem:[#allocation7 + $0x40] sm:$0xff]
          %v1504 = vld [vmem:[#allocation7 + $0x48] sm:$0xff]
          %v1505 = vld [vmem:[#allocation7 + $0x50] sm:$0xff]
          %v1506 = vld [vmem:[#allocation7 + $0x58] sm:$0xff]
          %v1507 = vld [vmem:[#allocation7 + $0x60] sm:$0xff]
          %v1508 = vld [vmem:[#allocation7 + $0x68] sm:$0xff]
          %v1509 = vld [vmem:[#allocation7 + $0x70] sm:$0xff]
          %v1510 = vld [vmem:[#allocation7 + $0x78] sm:$0xff]
          %v1511 = vld [vmem:[#allocation7 + $0x80] sm:$0xff]
          %v1512 = vld [vmem:[#allocation7 + $0x88] sm:$0xff]
          %v1513 = vld [vmem:[#allocation7 + $0x90] sm:$0xff]
          %v1514 = vld [vmem:[#allocation7 + $0x98] sm:$0xff]
          %v1515 = vld [vmem:[#allocation7 + $0xa0] sm:$0xff]
          %v1516 = vld [vmem:[#allocation7 + $0xa8] sm:$0xff]
          %v1517 = vld [vmem:[#allocation7 + $0xb0] sm:$0xff]
          %v1518 = vld [vmem:[#allocation7 + $0xb8] sm:$0xff]
          %v1519 = vld [vmem:[#allocation7 + $0xc0] sm:$0xff]
          %v1520 = vld [vmem:[#allocation7 + $0xc8] sm:$0xff]
          %v1521 = vld [vmem:[#allocation7 + $0xd0] sm:$0xff]
          %v1522 = vld [vmem:[#allocation7 + $0xd8] sm:$0xff]
          %v1523 = vld [vmem:[#allocation7 + $0xe0] sm:$0xff]
          %v1524 = vld [vmem:[#allocation7 + $0xe8] sm:$0xff]
          %v1525 = vld [vmem:[#allocation7 + $0xf0] sm:$0xff]
          %v1526 = vld [vmem:[#allocation7 + $0xf8] sm:$0xff]
          %v1527 = vld [vmem:[#allocation7 + $0x100] sm:$0xff]
          %v1528 = vld [vmem:[#allocation7 + $0x108] sm:$0xff]
          %v1529 = vld [vmem:[#allocation7 + $0x110] sm:$0xff]
          %v1530 = vld [vmem:[#allocation7 + $0x118] sm:$0xff]
          %v1531 = vld [vmem:[#allocation7 + $0x120] sm:$0xff]
          %v1532 = vld [vmem:[#allocation7 + $0x128] sm:$0xff]
          %v1533 = vld [vmem:[#allocation7 + $0x130] sm:$0xff]
          %v1534 = vld [vmem:[#allocation7 + $0x138] sm:$0xff]
          %v1535 = vld [vmem:[#allocation7 + $0x140] sm:$0xff]
          %v1536 = vld [vmem:[#allocation7 + $0x148] sm:$0xff]
          %v1537 = vld [vmem:[#allocation7 + $0x150] sm:$0xff]
          %v1538 = vld [vmem:[#allocation7 + $0x158] sm:$0xff]
          %v1539 = vld [vmem:[#allocation7 + $0x160] sm:$0xff]
          %v1540 = vld [vmem:[#allocation7 + $0x168] sm:$0xff]
          %v1541 = vld [vmem:[#allocation7 + $0x170] sm:$0xff]
          %v1542 = vld [vmem:[#allocation7 + $0x178] sm:$0xff]
          %v1591 = vunpack.c.l.b16 %v1495
          %v1592 = vunpack.c.h.b16 %v1495
          %v1593 = vunpack.c.l.b16 %v1496
          %v1594 = vunpack.c.h.b16 %v1496
          %v1595 = vunpack.c.l.b16 %v1497
          %v1596 = vunpack.c.h.b16 %v1497
          %v1597 = vunpack.c.l.b16 %v1498
          %v1598 = vunpack.c.h.b16 %v1498
          %v1599 = vunpack.c.l.b16 %v1499
          %v1600 = vunpack.c.h.b16 %v1499
          %v1601 = vunpack.c.l.b16 %v1500
          %v1602 = vunpack.c.h.b16 %v1500
          %v1603 = vunpack.c.l.b16 %v1501
          %v1604 = vunpack.c.h.b16 %v1501
          %v1605 = vunpack.c.l.b16 %v1502
          %v1606 = vunpack.c.h.b16 %v1502
          %v1607 = vunpack.c.l.b16 %v1503
          %v1608 = vunpack.c.h.b16 %v1503
          %v1609 = vunpack.c.l.b16 %v1504
          %v1610 = vunpack.c.h.b16 %v1504
          %v1611 = vunpack.c.l.b16 %v1505
          %v1612 = vunpack.c.h.b16 %v1505
          %v1613 = vunpack.c.l.b16 %v1506
          %v1614 = vunpack.c.h.b16 %v1506
          %v1615 = vunpack.c.l.b16 %v1507
          %v1616 = vunpack.c.h.b16 %v1507
          %v1617 = vunpack.c.l.b16 %v1508
          %v1618 = vunpack.c.h.b16 %v1508
          %v1619 = vunpack.c.l.b16 %v1509
          %v1620 = vunpack.c.h.b16 %v1509
          %v1621 = vunpack.c.l.b16 %v1510
          %v1622 = vunpack.c.h.b16 %v1510
          %v1623 = vunpack.c.l.b16 %v1511
          %v1624 = vunpack.c.h.b16 %v1511
          %v1625 = vunpack.c.l.b16 %v1512
          %v1626 = vunpack.c.h.b16 %v1512
          %v1627 = vunpack.c.l.b16 %v1513
          %v1628 = vunpack.c.h.b16 %v1513
          %v1629 = vunpack.c.l.b16 %v1514
          %v1630 = vunpack.c.h.b16 %v1514
          %v1631 = vunpack.c.l.b16 %v1515
          %v1632 = vunpack.c.h.b16 %v1515
          %v1633 = vunpack.c.l.b16 %v1516
          %v1634 = vunpack.c.h.b16 %v1516
          %v1635 = vunpack.c.l.b16 %v1517
          %v1636 = vunpack.c.h.b16 %v1517
          %v1637 = vunpack.c.l.b16 %v1518
          %v1638 = vunpack.c.h.b16 %v1518
          %v1639 = vunpack.c.l.b16 %v1519
          %v1640 = vunpack.c.h.b16 %v1519
          %v1641 = vunpack.c.l.b16 %v1520
          %v1642 = vunpack.c.h.b16 %v1520
          %v1643 = vunpack.c.l.b16 %v1521
          %v1644 = vunpack.c.h.b16 %v1521
          %v1645 = vunpack.c.l.b16 %v1522
          %v1646 = vunpack.c.h.b16 %v1522
          %v1647 = vunpack.c.l.b16 %v1523
          %v1648 = vunpack.c.h.b16 %v1523
          %v1649 = vunpack.c.l.b16 %v1524
          %v1650 = vunpack.c.h.b16 %v1524
          %v1651 = vunpack.c.l.b16 %v1525
          %v1652 = vunpack.c.h.b16 %v1525
          %v1653 = vunpack.c.l.b16 %v1526
          %v1654 = vunpack.c.h.b16 %v1526
          %v1655 = vunpack.c.l.b16 %v1527
          %v1656 = vunpack.c.h.b16 %v1527
          %v1657 = vunpack.c.l.b16 %v1528
          %v1658 = vunpack.c.h.b16 %v1528
          %v1659 = vunpack.c.l.b16 %v1529
          %v1660 = vunpack.c.h.b16 %v1529
          %v1661 = vunpack.c.l.b16 %v1530
          %v1662 = vunpack.c.h.b16 %v1530
          %v1663 = vunpack.c.l.b16 %v1531
          %v1664 = vunpack.c.h.b16 %v1531
          %v1665 = vunpack.c.l.b16 %v1532
          %v1666 = vunpack.c.h.b16 %v1532
          %v1667 = vunpack.c.l.b16 %v1533
          %v1668 = vunpack.c.h.b16 %v1533
          %v1669 = vunpack.c.l.b16 %v1534
          %v1670 = vunpack.c.h.b16 %v1534
          %v1671 = vunpack.c.l.b16 %v1535
          %v1672 = vunpack.c.h.b16 %v1535
          %v1673 = vunpack.c.l.b16 %v1536
          %v1674 = vunpack.c.h.b16 %v1536
          %v1675 = vunpack.c.l.b16 %v1537
          %v1676 = vunpack.c.h.b16 %v1537
          %v1677 = vunpack.c.l.b16 %v1538
          %v1678 = vunpack.c.h.b16 %v1538
          %v1679 = vunpack.c.l.b16 %v1539
          %v1680 = vunpack.c.h.b16 %v1539
          %v1681 = vunpack.c.l.b16 %v1540
          %v1682 = vunpack.c.h.b16 %v1540
          %v1683 = vunpack.c.l.b16 %v1541
          %v1684 = vunpack.c.h.b16 %v1541
          %v1685 = vunpack.c.l.b16 %v1542
          %v1686 = vunpack.c.h.b16 %v1542
          %v1687 = vpack.c.b16 %v1593, %v1591
          %v1688 = vpack.c.b16 %v1594, %v1592
          %v1689 = vpack.c.b16 %v1597, %v1595
          %v1690 = vpack.c.b16 %v1598, %v1596
          %v1691 = vpack.c.b16 %v1601, %v1599
          %v1692 = vpack.c.b16 %v1602, %v1600
          %v1693 = vpack.c.b16 %v1605, %v1603
          %v1694 = vpack.c.b16 %v1606, %v1604
          %v1695 = vpack.c.b16 %v1609, %v1607
          %v1696 = vpack.c.b16 %v1610, %v1608
          %v1697 = vpack.c.b16 %v1613, %v1611
          %v1698 = vpack.c.b16 %v1614, %v1612
          %v1699 = vpack.c.b16 %v1617, %v1615
          %v1700 = vpack.c.b16 %v1618, %v1616
          %v1701 = vpack.c.b16 %v1621, %v1619
          %v1702 = vpack.c.b16 %v1622, %v1620
          %v1703 = vpack.c.b16 %v1625, %v1623
          %v1704 = vpack.c.b16 %v1626, %v1624
          %v1705 = vpack.c.b16 %v1629, %v1627
          %v1706 = vpack.c.b16 %v1630, %v1628
          %v1707 = vpack.c.b16 %v1633, %v1631
          %v1708 = vpack.c.b16 %v1634, %v1632
          %v1709 = vpack.c.b16 %v1637, %v1635
          %v1710 = vpack.c.b16 %v1638, %v1636
          %v1711 = vpack.c.b16 %v1641, %v1639
          %v1712 = vpack.c.b16 %v1642, %v1640
          %v1713 = vpack.c.b16 %v1645, %v1643
          %v1714 = vpack.c.b16 %v1646, %v1644
          %v1715 = vpack.c.b16 %v1649, %v1647
          %v1716 = vpack.c.b16 %v1650, %v1648
          %v1717 = vpack.c.b16 %v1653, %v1651
          %v1718 = vpack.c.b16 %v1654, %v1652
          %v1719 = vpack.c.b16 %v1657, %v1655
          %v1720 = vpack.c.b16 %v1658, %v1656
          %v1721 = vpack.c.b16 %v1661, %v1659
          %v1722 = vpack.c.b16 %v1662, %v1660
          %v1723 = vpack.c.b16 %v1665, %v1663
          %v1724 = vpack.c.b16 %v1666, %v1664
          %v1725 = vpack.c.b16 %v1669, %v1667
          %v1726 = vpack.c.b16 %v1670, %v1668
          %v1727 = vpack.c.b16 %v1673, %v1671
          %v1728 = vpack.c.b16 %v1674, %v1672
          %v1729 = vpack.c.b16 %v1677, %v1675
          %v1730 = vpack.c.b16 %v1678, %v1676
          %v1731 = vpack.c.b16 %v1681, %v1679
          %v1732 = vpack.c.b16 %v1682, %v1680
          %v1733 = vpack.c.b16 %v1685, %v1683
          %v1734 = vpack.c.b16 %v1686, %v1684
          %1783 = vmatprep.subr.bf16.mxu0 %v1702
          %1784 = vmatpush1.bf16.msra.mxu0 %v1701
          %1785 = vmatprep.subr.bf16.mxu0 %v1700
          %1786 = vmatpush1.bf16.msra.mxu0 %v1699
          %1787 = vmatprep.subr.bf16.mxu0 %v1698
          %1788 = vmatpush1.bf16.msra.mxu0 %v1697
          %1789 = vmatprep.subr.bf16.mxu0 %v1696
          %1790 = vmatpush1.bf16.msra.mxu0 %v1695
          %1791 = vmatprep.subr.bf16.mxu0 %v1694
          %1792 = vmatpush1.bf16.msra.mxu0 %v1693
          %1793 = vmatprep.subr.bf16.mxu0 %v1692
          %1794 = vmatpush1.bf16.msra.mxu0 %v1691
          %1795 = vmatprep.subr.bf16.mxu0 %v1690
          %1796 = vmatpush1.bf16.msra.mxu0 %v1689
          %1797 = vmatprep.subr.bf16.mxu0 %v1688
          %1798 = vmatpush1.bf16.msra.mxu0 %v1687
          %1799 = vmatprep.subr.bf16.mxu0 %v1718
          %1800 = vmatpush2.bf16.msra.mxu0 %v1717
          %1801 = vmatprep.subr.bf16.mxu0 %v1716
          %1802 = vmatpush2.bf16.msra.mxu0 %v1715
          %1803 = vmatprep.subr.bf16.mxu0 %v1714
          %1804 = vmatpush2.bf16.msra.mxu0 %v1713
          %1805 = vmatprep.subr.bf16.mxu0 %v1712
          %1806 = vmatpush2.bf16.msra.mxu0 %v1711
          %1807 = vmatprep.subr.bf16.mxu0 %v1710
          %1808 = vmatpush2.bf16.msra.mxu0 %v1709
          %1809 = vmatprep.subr.bf16.mxu0 %v1708
          %1810 = vmatpush2.bf16.msra.mxu0 %v1707
          %1811 = vmatprep.subr.bf16.mxu0 %v1706
          %1812 = vmatpush2.bf16.msra.mxu0 %v1705
          %1813 = vmatprep.subr.bf16.mxu0 %v1704
          %1814 = vmatpush2.bf16.msra.mxu0 %v1703
          %1815 = vmatprep.mubr.bf16.mxu0 %v1493
          %1816 = vmatmul.mubr.bf16.gmra.mxu0 %v1492
          %v1817 = vpop.f32.mrf.mxu0
          %v1818 = vadd.f32 0.0, %v1817
          %v1819 = vpop.f32.mrf.mxu0
          %v1820 = vadd.f32 0.0, %v1819
          %v1821 = vpop.f32.mrf.mxu0
          %v1822 = vpop.f32.mrf.mxu0
          %1823 = vdwg.mxu0
          %1824 = vmatprep.subr.bf16.mxu0 %v1734
          %1825 = vmatpush1.bf16.msra.mxu0 %v1733
          %1826 = vmatprep.subr.bf16.mxu0 %v1732
          %1827 = vmatpush1.bf16.msra.mxu0 %v1731
          %1828 = vmatprep.subr.bf16.mxu0 %v1730
          %1829 = vmatpush1.bf16.msra.mxu0 %v1729
          %1830 = vmatprep.subr.bf16.mxu0 %v1728
          %1831 = vmatpush1.bf16.msra.mxu0 %v1727
          %1832 = vmatprep.subr.bf16.mxu0 %v1726
          %1833 = vmatpush1.bf16.msra.mxu0 %v1725
          %1834 = vmatprep.subr.bf16.mxu0 %v1724
          %1835 = vmatpush1.bf16.msra.mxu0 %v1723
          %1836 = vmatprep.subr.bf16.mxu0 %v1722
          %1837 = vmatpush1.bf16.msra.mxu0 %v1721
          %1838 = vmatprep.subr.bf16.mxu0 %v1720
          %1839 = vmatpush1.bf16.msra.mxu0 %v1719
          %1840 = vmatprep.subr.bf16.mxu0 0
          %1841 = vmatpush2.bf16.msra.mxu0 0
          %1842 = vmatprep.subr.bf16.mxu0 0
          %1843 = vmatpush2.bf16.msra.mxu0 0
          %1844 = vmatprep.subr.bf16.mxu0 0
          %1845 = vmatpush2.bf16.msra.mxu0 0
          %1846 = vmatprep.subr.bf16.mxu0 0
          %1847 = vmatpush2.bf16.msra.mxu0 0
          %1848 = vmatprep.subr.bf16.mxu0 0
          %1849 = vmatpush2.bf16.msra.mxu0 0
          %1850 = vmatprep.subr.bf16.mxu0 0
          %1851 = vmatpush2.bf16.msra.mxu0 0
          %1852 = vmatprep.subr.bf16.mxu0 0
          %1853 = vmatpush2.bf16.msra.mxu0 0
          %1854 = vmatprep.subr.bf16.mxu0 0
          %1855 = vmatpush2.bf16.msra.mxu0 0
          %1856 = vmatprep.mubr.bf16.mxu0 0
          %1857 = vmatmul.mubr.bf16.gmra.mxu0 %v1494
          %v1858 = vpop.f32.mrf.mxu0
          %v1859 = vadd.f32 %v1818, %v1858
          %v1860 = vpop.f32.mrf.mxu0
          %v1861 = vadd.f32 %v1820, %v1860
          %v1862 = vpop.f32.mrf.mxu0
          %v1863 = vpop.f32.mrf.mxu0
          %1864 = vdwg.mxu0
          %v1867 = vcombine.low %v1859, %v1861
          %v1869 = vunpack.c.l.s4 1983009808
          %v1870 = vunpack.c.0.s8 %v1869
          %v1871 = vlaneseq
          %v1872 = vshrl.u32 %v1871, 7
          %v1873 = vsub.s32 %v1870, %v1872
          %v1874 = vrot.slane %v1867, %v1873
          %1876 = vst [vmem:[#allocation12] sm:$0xf] %v1874
        $region101: #{tpu_custom_call.1} parent=80 // pred_fallthru
          _
        // Predicated region
        $region102: #{tpu_custom_call.1} parent=80 // pred_check
          %p1877 = pneg %p187
        $region103: #{tpu_custom_call.1} parent=80 // pred_check_branch
          %1879 = sbr.rel (%p1877) target = $region105
        $region104: #{tpu_custom_call.1} parent=80 // pred_region
          %s1881 = ssub.s32 32, 32
          %1882 = vsyncadd [#allocation6], %s1881
          %s1883 = smul.addr %s28, 32
          %s1884 = scalar_lea.hbm %s6, %s1883
          %s1886 = sshll.u32 [#allocation9], 4
          %s1887 = int_to_ptr.vmem [resolvable:$true] %s1886
          %1889 = dma.vmem_to_hbm [thread:$0]  %s1887, 32, %s1884, [#allocation6]
        $region105: #{tpu_custom_call.1} parent=80 // pred_fallthru
          _
        // Predicated region
        $region106: #{tpu_custom_call.1} parent=80 // pred_check
          %p1890 = pneg %p213
        $region107: #{tpu_custom_call.1} parent=80 // pred_check_branch
          %1892 = sbr.rel (%p1890) target = $region109
        $region108: #{tpu_custom_call.1} parent=80 // pred_region
          %s1894 = ssub.s32 96, 96
          %1895 = vsyncadd [#allocation11], %s1894
          %s1896 = smul.addr %s28, 3
          %s1897 = smul.addr %s1896, 32
          %s1898 = scalar_lea.hbm %s7, %s1897
          %s1900 = sshll.u32 [#allocation10], 4
          %s1901 = int_to_ptr.vmem [resolvable:$true] %s1900
          %1903 = dma.vmem_to_hbm [thread:$0]  %s1901, 96, %s1898, [#allocation11]
        $region109: #{tpu_custom_call.1} parent=80 // pred_fallthru
          _
        // Predicated region
        $region110: #{tpu_custom_call.1} parent=80 // pred_check
          %p1904 = pneg %p239
        $region111: #{tpu_custom_call.1} parent=80 // pred_check_branch
          %1906 = sbr.rel (%p1904) target = $region113
        $region112: #{tpu_custom_call.1} parent=80 // pred_region
          %s1908 = ssub.s32 64, 64
          %1909 = vsyncadd [#allocation11], %s1908
          %s1910 = smul.addr %s28, 2
          %s1911 = smul.addr %s1910, 32
          %s1912 = scalar_lea.hbm %s8, %s1911
          %s1914 = sshll.u32 [#allocation12], 4
          %s1915 = int_to_ptr.vmem [resolvable:$true] %s1914
          %1917 = dma.vmem_to_hbm [thread:$0]  %s1915, 64, %s1912, [#allocation11]
        $region113: #{tpu_custom_call.1} parent=80 // pred_fallthru
          _
        // Predicated region
        $region114: #{tpu_custom_call.1} parent=80 // pred_check
          %p1918 = pneg %p187
        $region115: #{tpu_custom_call.1} parent=80 // pred_check_branch
          %1920 = sbr.rel (%p1918) target = $region117
        $region116: #{tpu_custom_call.1} parent=80 // pred_region
          %1921 = dma.done [#allocation6], 32
        $region117: #{tpu_custom_call.1} parent=80 // pred_fallthru
          _
        // Predicated region
        $region118: #{tpu_custom_call.1} parent=80 // pred_check
          %p1922 = pneg %p213
        $region119: #{tpu_custom_call.1} parent=80 // pred_check_branch
          %1924 = sbr.rel (%p1922) target = $region121
        $region120: #{tpu_custom_call.1} parent=80 // pred_region
          %1925 = dma.done [#allocation11], 96
        $region121: #{tpu_custom_call.1} parent=80 // pred_fallthru
          _
        // Predicated region
        $region122: #{tpu_custom_call.1} parent=80 // pred_check
          %p1926 = pneg %p239
        $region123: #{tpu_custom_call.1} parent=80 // pred_check_branch
          %1928 = sbr.rel (%p1926) target = $region125
        $region124: #{tpu_custom_call.1} parent=80 // pred_region
          %1929 = dma.done [#allocation11], 64
        $region125: #{tpu_custom_call.1} parent=80 // pred_fallthru
          _
      $region81: #{tpu_custom_call.1} parent=5 // pred_fallthru
        _
      %p1930 = scmp.le.s32.totalorder 2, %s19
      // Predicated region
      $region126: #{tpu_custom_call.1} parent=5 // pred_check
        %p1931 = pneg %p1930
      $region127: #{tpu_custom_call.1} parent=5 // pred_check_branch
        %1933 = sbr.rel (%p1931) target = $region129
      $region128: #{tpu_custom_call.1} parent=5 // pred_region
        %s1934 = ssub.s32 %s19, 2
      $region129: #{tpu_custom_call.1} parent=5 // pred_fallthru
        _
    $region6: #{tpu_custom_call.1} parent=1 // loop_footer
      %s23 = sadd.s32 1, %s19
    $region7: #{tpu_custom_call.1} parent=1 // loop_footer_branch
      %18 = sbr.rel target = $region3
    $region8: #{tpu_custom_call.1} parent=1 // loop_exit
      _
    %1935 = vsyncpa [#allocation5], 1
    %s1936 = scalar_lea.sflag [#allocation5], 1
    %1937 = vsyncpa %s1936, 1
    %1938 = vsyncpa [#allocation8], 1
    %1939 = vsyncpa [#allocation6], 1
    %s1940 = scalar_lea.sflag [#allocation6], 1
    %1941 = vsyncpa %s1940, 1
    %1942 = vsyncpa [#allocation11], 1

</llo_original>
